<compile_context>
chip_gen: v7x
topology: tpu7x:2x2x1
jax: 0.10.0
libtpu: 0.0.40
codegen_flags: <defaults>
</compile_context>

<pallas_src>
import functools
import jax
import jax.numpy as jnp
from jax.experimental import pallas as pl
from jax.experimental.pallas import tpu as pltpu


# ----------------------------------------------------------------------------
# Pallas kernel: whole FlowStep forward fused (all matmuls + elementwise + reductions)
# One grid step processes TILE_B rows; weights are resident in VMEM.
# ----------------------------------------------------------------------------
def _flow_step_kernel(
    # data tiles
    x_ref, cond_ref,
    # condition-embedding MLP (output layer = [scale | bias] halves, ActNorm folded into bias)
    w1_ref, b1_ref, w2_ref, b2_ref,
    # LU linear
    wlin_ref, blin_ref, ld2_ref,
    # additive coupling net (input layer for x and condition fused into one matrix)
    mask_ref, win_ref, bin_ref, wh_ref, bh_ref, wout_ref, bout_ref,
    # outputs
    xout_ref, logdet_ref,
    *, num_blocks, dim,
):
    f32 = jnp.float32
    bf16 = jnp.bfloat16

    x = x_ref[...]                          # (TB, D) f32
    cond_bf = cond_ref[...].astype(bf16)    # (TB, C) bf16 (MXU operand)

    # ---- condition embedding MLP -> [log_scale | shift] (one fused output matmul) ----
    h = jnp.dot(cond_bf, w1_ref[...], preferred_element_type=f32) + b1_ref[...]
    h = jnp.maximum(h, 0.0)                                                   # f32 ReLU
    drift = jnp.dot(h.astype(bf16), w2_ref[...], preferred_element_type=f32) + b2_ref[...]
    log_scale = drift[:, :dim]      # ActNorm log_scale + scale_drift (folded into b2)
    shift = drift[:, dim:]          # ActNorm bias     + bias_drift  (folded into b2)

    # ---- ActNorm (f32 elementwise; exp left unclamped to match reference semantics) ----
    y = jnp.exp(log_scale) * x + shift
    logdet1 = jnp.sum(log_scale, axis=1, keepdims=True)                       # (TB, 1)

    # ---- LULinear (logdet2 is weight-only: precomputed, passed as SMEM scalar) ----
    y = jnp.dot(y.astype(bf16), wlin_ref[...], preferred_element_type=f32) + blin_ref[...]

    # ---- AdditiveCoupling: input layer fused as concat([mask*y, cond]) @ [win_x; win_c] ----
    mask = mask_ref[...]                                                      # (1, D) f32
    cat = jnp.concatenate([(y * mask).astype(bf16), cond_bf], axis=1)         # (TB, D+C)
    t = jnp.dot(cat, win_ref[...], preferred_element_type=f32) + bin_ref[...]
    t = jnp.maximum(t, 0.0)
    for k in range(num_blocks):      # small static trip count; unrolled at trace time
        t = jnp.maximum(
            jnp.dot(t.astype(bf16), wh_ref[k], preferred_element_type=f32) + bh_ref[k],
            0.0)
    t = jnp.dot(t.astype(bf16), wout_ref[...], preferred_element_type=f32) + bout_ref[...]
    y = y + (1.0 - mask) * t                                                  # logdet3 == 0

    xout_ref[...] = y.astype(xout_ref.dtype)
    logdet_ref[...] = (logdet1 + ld2_ref[0, 0]).astype(logdet_ref.dtype)


def flow_step_forward(x, condition, params, *, num_blocks, tile_b=128):
    B, D = x.shape
    C = condition.shape[1]
    assert B % tile_b == 0, "batch must be a multiple of tile_b"
    kernel = functools.partial(_flow_step_kernel, num_blocks=num_blocks, dim=D)

    def const_map(ndim):
        zeros = (0,) * ndim
        return lambda i: zeros

    def resident(arr):   # weight: full block, constant index map -> fetched once, stays in VMEM
        return pl.BlockSpec(arr.shape, const_map(arr.ndim))

    def smem(arr):       # tiny scalar parameter in SMEM
        return pl.BlockSpec(arr.shape, const_map(arr.ndim),
                            memory_space=pltpu.MemorySpace.SMEM)

    ordered = [
        x, condition,
        params["w1"], params["b1"], params["w2"], params["b2"],
        params["wlin"], params["blin"], params["logdet2"],
        params["mask"], params["win"], params["bin"],
        params["wh"], params["bh"], params["wout"], params["bout"],
    ]
    in_specs = [
        pl.BlockSpec((tile_b, D), lambda i: (i, 0)),   # x tile (pipelined)
        pl.BlockSpec((tile_b, C), lambda i: (i, 0)),   # condition tile (pipelined)
        resident(params["w1"]), resident(params["b1"]),
        resident(params["w2"]), resident(params["b2"]),
        resident(params["wlin"]), resident(params["blin"]),
        smem(params["logdet2"]),
        resident(params["mask"]),
        resident(params["win"]), resident(params["bin"]),
        resident(params["wh"]), resident(params["bh"]),
        resident(params["wout"]), resident(params["bout"]),
    ]
    out_specs = (
        pl.BlockSpec((tile_b, D), lambda i: (i, 0)),   # lane-dense (D = 128) output tile
        pl.BlockSpec((tile_b, 1), lambda i: (i, 0)),   # per-row log-det (tiny traffic)
    )

    x_out, logdet = pl.pallas_call(
        kernel,
        grid=(B // tile_b,),
        out_shape=(
            jax.ShapeDtypeStruct((B, D), x.dtype),
            jax.ShapeDtypeStruct((B, 1), jnp.float32),
        ),
        in_specs=in_specs,
        out_specs=out_specs,
        compiler_params=pltpu.CompilerParams(
            dimension_semantics=("parallel",),          # megacore-shard the batch grid (v7x)
            vmem_limit_bytes=32 * 1024 * 1024,          # resident weights + tiles << 32 MiB
        ),
    )(*ordered)
    return x_out, logdet.reshape(B)


# ----------------------------------------------------------------------------
# Pure-JAX reference using the same mixed-precision policy (bf16 MXU operands,
# f32 accumulation / elementwise) for a tight sanity check.
# ----------------------------------------------------------------------------
def flow_step_ref(x, cond, p, *, num_blocks):
    f32, bf16 = jnp.float32, jnp.bfloat16
    D = x.shape[1]
    dot = lambda a, b: jnp.dot(a.astype(bf16), b, preferred_element_type=f32)

    h = jnp.maximum(dot(cond, p["w1"]) + p["b1"], 0.0)
    drift = dot(h, p["w2"]) + p["b2"]
    log_scale, shift = drift[:, :D], drift[:, D:]
    y = jnp.exp(log_scale) * x + shift
    logdet1 = jnp.sum(log_scale, axis=1)
    y = dot(y, p["wlin"]) + p["blin"]
    mask = p["mask"]
    cat = jnp.concatenate([(y * mask).astype(bf16), cond.astype(bf16)], axis=1)
    t = jnp.maximum(jnp.dot(cat, p["win"], preferred_element_type=f32) + p["bin"], 0.0)
    for k in range(num_blocks):
        t = jnp.maximum(dot(t, p["wh"][k]) + p["bh"][k], 0.0)
    t = dot(t, p["wout"]) + p["bout"]
    y = y + (1.0 - mask) * t
    return y, logdet1 + p["logdet2"][0, 0]


# ----------------------------------------------------------------------------
# Deterministic parameter construction (synthetic init, no checkpoint).
# One-time folds: even/odd de-interleave -> contiguous halves, ActNorm params into the
# embedding output bias, win_x/win_c stacked, logdet2 precomputed, weights cast to bf16.
# ----------------------------------------------------------------------------
def make_params(key, dim, hidden_dim, num_blocks, c_dim):
    ks = jax.random.split(key, 16)
    f = jnp.float32
    bf = jnp.bfloat16
    s = 0.1    # small init scale
    s2 = 0.02  # embedding output scale (keeps exp(log_scale) well-conditioned)

    # condition embedding MLP: c_dim -> hidden -> 2*dim  (even cols = scale, odd = bias)
    w1 = jax.random.normal(ks[0], (c_dim, hidden_dim), f) * s
    b1 = jax.random.normal(ks[1], (1, hidden_dim), f) * s
    w2_raw = jax.random.normal(ks[2], (hidden_dim, 2 * dim), f) * s2
    b2_raw = jax.random.normal(ks[3], (1, 2 * dim), f) * s2

    # ActNorm params
    an_logscale = jax.random.normal(ks[4], (1, dim), f) * s
    an_bias = jax.random.normal(ks[5], (1, dim), f) * s

    # fold: de-interleave [:, 0::2]/[:, 1::2] into contiguous [scale | bias] halves,
    # and fold ActNorm log_scale / bias into the output bias (pure parameter transform).
    w2 = jnp.concatenate([w2_raw[:, 0::2], w2_raw[:, 1::2]], axis=1)
    b2 = jnp.concatenate([b2_raw[:, 0::2] + an_logscale,
                          b2_raw[:, 1::2] + an_bias], axis=1)

    # LULinear: W = L @ U, L unit-lower, U upper with positive diag
    lower = jnp.tril(jax.random.normal(ks[6], (dim, dim), f) * s, k=-1) + jnp.eye(dim, dtype=f)
    logdiag = jax.random.normal(ks[7], (1, dim), f) * s
    upper = jnp.triu(jax.random.normal(ks[8], (dim, dim), f) * s, k=1) + jnp.diag(jnp.exp(logdiag[0]))
    wlin = (lower @ upper).T                       # kernel computes x @ wlin  (== x @ W.T)
    blin = jax.random.normal(ks[9], (1, dim), f) * s
    logdet2 = jnp.sum(logdiag).reshape(1, 1)       # weight-only: hoisted out of the kernel

    # additive coupling: alternating binary mask + transform net (input layer fused)
    mask = (jnp.arange(dim) % 2).astype(f).reshape(1, dim)
    win_x = jax.random.normal(ks[10], (dim, hidden_dim), f) * s
    win_c = jax.random.normal(ks[11], (c_dim, hidden_dim), f) * s
    win = jnp.concatenate([win_x, win_c], axis=0)  # (dim + c_dim, hidden)
    bin_ = jax.random.normal(ks[12], (1, hidden_dim), f) * s
    wh = jax.random.normal(ks[13], (num_blocks, hidden_dim, hidden_dim), f) * s
    bh = jax.random.normal(ks[14], (num_blocks, 1, hidden_dim), f) * s
    wout = jax.random.normal(ks[15], (hidden_dim, dim), f) * s
    bout = jnp.zeros((1, dim), f)

    return dict(
        w1=w1.astype(bf), b1=b1,
        w2=w2.astype(bf), b2=b2,
        wlin=wlin.astype(bf), blin=blin, logdet2=logdet2,
        mask=mask, win=win.astype(bf), bin=bin_,
        wh=wh.astype(bf), bh=bh,
        wout=wout.astype(bf), bout=bout,
    )


if __name__ == "__main__":
    # Lane-dense sizes (multiples of 128) so MXU/VPU lanes are fully used and output
    # stores are unmasked; batch tiled by 128 over a "parallel" grid (4 steps).
    B, DIM, HIDDEN, C_DIM, NUM_BLOCKS = 512, 128, 128, 128, 2
    TILE_B = 128

    key = jax.random.PRNGKey(0)
    kx, kc, kp = jax.random.split(key, 3)
    x = jax.random.normal(kx, (B, DIM), jnp.float32)
    condition = jax.random.normal(kc, (B, C_DIM), jnp.float32)
    params = make_params(kp, DIM, HIDDEN, NUM_BLOCKS, C_DIM)

    x_out, logdet = flow_step_forward(x, condition, params,
                                      num_blocks=NUM_BLOCKS, tile_b=TILE_B)
    jax.block_until_ready((x_out, logdet))

    x_ref, logdet_ref = flow_step_ref(x, condition, params, num_blocks=NUM_BLOCKS)
    assert x_out.shape == (B, DIM) and logdet.shape == (B,)
    assert jnp.allclose(x_out, x_ref, atol=5e-3, rtol=5e-3), \
        float(jnp.max(jnp.abs(x_out - x_ref)))
    assert jnp.allclose(logdet, logdet_ref, atol=5e-3, rtol=5e-3), \
        float(jnp.max(jnp.abs(logdet - logdet_ref)))

    print("KERNEL_OK")
</pallas_src>

<mosaic_0001>
module attributes {stable_mosaic.version = 11 : i64} {
  func.func @_flow_step_kernel(%arg0: i32, %arg1: memref<128x128xf32, #tpu.memory_space<vmem>>, %arg2: memref<128x128xf32, #tpu.memory_space<vmem>>, %arg3: memref<128x128xbf16, #tpu.memory_space<vmem>>, %arg4: memref<1x128xf32, #tpu.memory_space<vmem>>, %arg5: memref<128x256xbf16, #tpu.memory_space<vmem>>, %arg6: memref<1x256xf32, #tpu.memory_space<vmem>>, %arg7: memref<128x128xbf16, #tpu.memory_space<vmem>>, %arg8: memref<1x128xf32, #tpu.memory_space<vmem>>, %arg9: memref<1x1xf32, #tpu.memory_space<smem>>, %arg10: memref<1x128xf32, #tpu.memory_space<vmem>>, %arg11: memref<256x128xbf16, #tpu.memory_space<vmem>>, %arg12: memref<1x128xf32, #tpu.memory_space<vmem>>, %arg13: memref<2x128x128xbf16, #tpu.memory_space<vmem>>, %arg14: memref<2x1x128xf32, #tpu.memory_space<vmem>>, %arg15: memref<128x128xbf16, #tpu.memory_space<vmem>>, %arg16: memref<1x128xf32, #tpu.memory_space<vmem>>, %arg17: memref<128x128xf32, #tpu.memory_space<vmem>>, %arg18: memref<128x1xf32, #tpu.memory_space<vmem>>) attributes {dimension_semantics = [#tpu.dimension_semantics<parallel>], iteration_bounds = array<i64: 4>, scalar_prefetch = 0 : i64, scratch_operands = 0 : i64, tpu.core_type = #tpu.core_type<tc>, window_params = [{transform_indices = @transform_0, window_bounds = array<i64: 128, 128>}, {transform_indices = @transform_1, window_bounds = array<i64: 128, 128>}, {pipeline_mode = #tpu.pipeline_mode<synchronous>, transform_indices = @transform_2, window_bounds = array<i64: 128, 128>}, {pipeline_mode = #tpu.pipeline_mode<synchronous>, transform_indices = @transform_3, window_bounds = array<i64: 1, 128>}, {pipeline_mode = #tpu.pipeline_mode<synchronous>, transform_indices = @transform_4, window_bounds = array<i64: 128, 256>}, {pipeline_mode = #tpu.pipeline_mode<synchronous>, transform_indices = @transform_5, window_bounds = array<i64: 1, 256>}, {pipeline_mode = #tpu.pipeline_mode<synchronous>, transform_indices = @transform_6, window_bounds = array<i64: 128, 128>}, {pipeline_mode = #tpu.pipeline_mode<synchronous>, transform_indices = @transform_7, window_bounds = array<i64: 1, 128>}, {transform_indices = @transform_8, window_bounds = array<i64: 1, 1>}, {pipeline_mode = #tpu.pipeline_mode<synchronous>, transform_indices = @transform_9, window_bounds = array<i64: 1, 128>}, {pipeline_mode = #tpu.pipeline_mode<synchronous>, transform_indices = @transform_10, window_bounds = array<i64: 256, 128>}, {pipeline_mode = #tpu.pipeline_mode<synchronous>, transform_indices = @transform_11, window_bounds = array<i64: 1, 128>}, {pipeline_mode = #tpu.pipeline_mode<synchronous>, transform_indices = @transform_12, window_bounds = array<i64: 2, 128, 128>}, {pipeline_mode = #tpu.pipeline_mode<synchronous>, transform_indices = @transform_13, window_bounds = array<i64: 2, 1, 128>}, {pipeline_mode = #tpu.pipeline_mode<synchronous>, transform_indices = @transform_14, window_bounds = array<i64: 128, 128>}, {pipeline_mode = #tpu.pipeline_mode<synchronous>, transform_indices = @transform_15, window_bounds = array<i64: 1, 128>}, {transform_indices = @transform_16, window_bounds = array<i64: 128, 128>}, {transform_indices = @transform_17, window_bounds = array<i64: 128, 1>}]} {
    %c0 = arith.constant 0 : index
    %c0_0 = arith.constant 0 : index
    %0 = vector.load %arg1[%c0, %c0_0] : memref<128x128xf32, #tpu.memory_space<vmem>>, vector<128x128xf32>
    %c0_1 = arith.constant 0 : index
    %c0_2 = arith.constant 0 : index
    %1 = vector.load %arg2[%c0_1, %c0_2] : memref<128x128xf32, #tpu.memory_space<vmem>>, vector<128x128xf32>
    %2 = arith.truncf %1 : vector<128x128xf32> to vector<128x128xbf16>
    %c0_3 = arith.constant 0 : index
    %c0_4 = arith.constant 0 : index
    %3 = vector.load %arg3[%c0_3, %c0_4] : memref<128x128xbf16, #tpu.memory_space<vmem>>, vector<128x128xbf16>
    %cst = arith.constant dense<0.000000e+00> : vector<128x128xf32>
    %4 = tpu.matmul %2, %3, %cst {dimension_numbers = #tpu.dot_dimension_numbers<[1], [0], [0], [1], [0, 0, 1, 1], [], []>} : vector<128x128xbf16>, vector<128x128xbf16>, vector<128x128xf32> -> vector<128x128xf32>
    %c0_5 = arith.constant 0 : index
    %c0_6 = arith.constant 0 : index
    %5 = vector.load %arg4[%c0_5, %c0_6] : memref<1x128xf32, #tpu.memory_space<vmem>>, vector<1x128xf32>
    %6 = vector.broadcast %5 : vector<1x128xf32> to vector<128x128xf32>
    %7 = arith.addf %4, %6 : vector<128x128xf32>
    %cst_7 = arith.constant 0.000000e+00 : f32
    %8 = vector.broadcast %cst_7 : f32 to vector<128x128xf32>
    %9 = arith.maximumf %7, %8 : vector<128x128xf32>
    %10 = arith.truncf %9 : vector<128x128xf32> to vector<128x128xbf16>
    %c0_8 = arith.constant 0 : index
    %c0_9 = arith.constant 0 : index
    %11 = vector.load %arg5[%c0_8, %c0_9] : memref<128x256xbf16, #tpu.memory_space<vmem>>, vector<128x256xbf16>
    %cst_10 = arith.constant dense<0.000000e+00> : vector<128x256xf32>
    %12 = tpu.matmul %10, %11, %cst_10 {dimension_numbers = #tpu.dot_dimension_numbers<[1], [0], [0], [1], [0, 0, 1, 1], [], []>} : vector<128x128xbf16>, vector<128x256xbf16>, vector<128x256xf32> -> vector<128x256xf32>
    %c0_11 = arith.constant 0 : index
    %c0_12 = arith.constant 0 : index
    %13 = vector.load %arg6[%c0_11, %c0_12] : memref<1x256xf32, #tpu.memory_space<vmem>>, vector<1x256xf32>
    %14 = vector.broadcast %13 : vector<1x256xf32> to vector<128x256xf32>
    %15 = arith.addf %12, %14 : vector<128x256xf32>
    %16 = vector.extract_strided_slice %15 {offsets = [0, 0], sizes = [128, 128], strides = [1, 1]} : vector<128x256xf32> to vector<128x128xf32>
    %17 = vector.extract_strided_slice %15 {offsets = [0, 128], sizes = [128, 128], strides = [1, 1]} : vector<128x256xf32> to vector<128x128xf32>
    %18 = math.exp %16 : vector<128x128xf32>
    %19 = arith.mulf %18, %0 : vector<128x128xf32>
    %20 = arith.addf %19, %17 : vector<128x128xf32>
    %cst_13 = arith.constant dense<0.000000e+00> : vector<128xf32>
    %21 = vector.multi_reduction <add>, %16, %cst_13 [1] : vector<128x128xf32> to vector<128xf32>
    %22 = vector.shape_cast %21 : vector<128xf32> to vector<128x1xf32>
    %23 = arith.truncf %20 : vector<128x128xf32> to vector<128x128xbf16>
    %c0_14 = arith.constant 0 : index
    %c0_15 = arith.constant 0 : index
    %24 = vector.load %arg7[%c0_14, %c0_15] : memref<128x128xbf16, #tpu.memory_space<vmem>>, vector<128x128xbf16>
    %cst_16 = arith.constant dense<0.000000e+00> : vector<128x128xf32>
    %25 = tpu.matmul %23, %24, %cst_16 {dimension_numbers = #tpu.dot_dimension_numbers<[1], [0], [0], [1], [0, 0, 1, 1], [], []>} : vector<128x128xbf16>, vector<128x128xbf16>, vector<128x128xf32> -> vector<128x128xf32>
    %c0_17 = arith.constant 0 : index
    %c0_18 = arith.constant 0 : index
    %26 = vector.load %arg8[%c0_17, %c0_18] : memref<1x128xf32, #tpu.memory_space<vmem>>, vector<1x128xf32>
    %27 = vector.broadcast %26 : vector<1x128xf32> to vector<128x128xf32>
    %28 = arith.addf %25, %27 : vector<128x128xf32>
    %c0_19 = arith.constant 0 : index
    %c0_20 = arith.constant 0 : index
    %29 = vector.load %arg10[%c0_19, %c0_20] : memref<1x128xf32, #tpu.memory_space<vmem>>, vector<1x128xf32>
    %30 = vector.broadcast %29 : vector<1x128xf32> to vector<128x128xf32>
    %31 = arith.mulf %28, %30 : vector<128x128xf32>
    %32 = arith.truncf %31 : vector<128x128xf32> to vector<128x128xbf16>
    %33 = tpu.concatenate %32, %2 in 1 : vector<128x128xbf16>, vector<128x128xbf16> -> vector<128x256xbf16>
    %c0_21 = arith.constant 0 : index
    %c0_22 = arith.constant 0 : index
    %34 = vector.load %arg11[%c0_21, %c0_22] : memref<256x128xbf16, #tpu.memory_space<vmem>>, vector<256x128xbf16>
    %cst_23 = arith.constant dense<0.000000e+00> : vector<128x128xf32>
    %35 = tpu.matmul %33, %34, %cst_23 {dimension_numbers = #tpu.dot_dimension_numbers<[1], [0], [0], [1], [0, 0, 1, 1], [], []>} : vector<128x256xbf16>, vector<256x128xbf16>, vector<128x128xf32> -> vector<128x128xf32>
    %c0_24 = arith.constant 0 : index
    %c0_25 = arith.constant 0 : index
    %36 = vector.load %arg12[%c0_24, %c0_25] : memref<1x128xf32, #tpu.memory_space<vmem>>, vector<1x128xf32>
    %37 = vector.broadcast %36 : vector<1x128xf32> to vector<128x128xf32>
    %38 = arith.addf %35, %37 : vector<128x128xf32>
    %cst_26 = arith.constant 0.000000e+00 : f32
    %39 = vector.broadcast %cst_26 : f32 to vector<128x128xf32>
    %40 = arith.maximumf %38, %39 : vector<128x128xf32>
    %41 = arith.truncf %40 : vector<128x128xf32> to vector<128x128xbf16>
    %c0_27 = arith.constant 0 : index
    %c0_28 = arith.constant 0 : index
    %c0_29 = arith.constant 0 : index
    %42 = vector.load %arg13[%c0_27, %c0_28, %c0_29] : memref<2x128x128xbf16, #tpu.memory_space<vmem>>, vector<1x128x128xbf16>
    %43 = vector.shape_cast %42 : vector<1x128x128xbf16> to vector<128x128xbf16>
    %cst_30 = arith.constant dense<0.000000e+00> : vector<128x128xf32>
    %44 = tpu.matmul %41, %43, %cst_30 {dimension_numbers = #tpu.dot_dimension_numbers<[1], [0], [0], [1], [0, 0, 1, 1], [], []>} : vector<128x128xbf16>, vector<128x128xbf16>, vector<128x128xf32> -> vector<128x128xf32>
    %c0_31 = arith.constant 0 : index
    %c0_32 = arith.constant 0 : index
    %c0_33 = arith.constant 0 : index
    %45 = vector.load %arg14[%c0_31, %c0_32, %c0_33] : memref<2x1x128xf32, #tpu.memory_space<vmem>>, vector<1x1x128xf32>
    %46 = vector.shape_cast %45 : vector<1x1x128xf32> to vector<1x128xf32>
    %47 = vector.broadcast %46 : vector<1x128xf32> to vector<128x128xf32>
    %48 = arith.addf %44, %47 : vector<128x128xf32>
    %cst_34 = arith.constant 0.000000e+00 : f32
    %49 = vector.broadcast %cst_34 : f32 to vector<128x128xf32>
    %50 = arith.maximumf %48, %49 : vector<128x128xf32>
    %51 = arith.truncf %50 : vector<128x128xf32> to vector<128x128xbf16>
    %c1 = arith.constant 1 : index
    %c0_35 = arith.constant 0 : index
    %c0_36 = arith.constant 0 : index
    %52 = vector.load %arg13[%c1, %c0_35, %c0_36] : memref<2x128x128xbf16, #tpu.memory_space<vmem>>, vector<1x128x128xbf16>
    %53 = vector.shape_cast %52 : vector<1x128x128xbf16> to vector<128x128xbf16>
    %cst_37 = arith.constant dense<0.000000e+00> : vector<128x128xf32>
    %54 = tpu.matmul %51, %53, %cst_37 {dimension_numbers = #tpu.dot_dimension_numbers<[1], [0], [0], [1], [0, 0, 1, 1], [], []>} : vector<128x128xbf16>, vector<128x128xbf16>, vector<128x128xf32> -> vector<128x128xf32>
    %c1_38 = arith.constant 1 : index
    %c0_39 = arith.constant 0 : index
    %c0_40 = arith.constant 0 : index
    %55 = vector.load %arg14[%c1_38, %c0_39, %c0_40] : memref<2x1x128xf32, #tpu.memory_space<vmem>>, vector<1x1x128xf32>
    %56 = vector.shape_cast %55 : vector<1x1x128xf32> to vector<1x128xf32>
    %57 = vector.broadcast %56 : vector<1x128xf32> to vector<128x128xf32>
    %58 = arith.addf %54, %57 : vector<128x128xf32>
    %cst_41 = arith.constant 0.000000e+00 : f32
    %59 = vector.broadcast %cst_41 : f32 to vector<128x128xf32>
    %60 = arith.maximumf %58, %59 : vector<128x128xf32>
    %61 = arith.truncf %60 : vector<128x128xf32> to vector<128x128xbf16>
    %c0_42 = arith.constant 0 : index
    %c0_43 = arith.constant 0 : index
    %62 = vector.load %arg15[%c0_42, %c0_43] : memref<128x128xbf16, #tpu.memory_space<vmem>>, vector<128x128xbf16>
    %cst_44 = arith.constant dense<0.000000e+00> : vector<128x128xf32>
    %63 = tpu.matmul %61, %62, %cst_44 {dimension_numbers = #tpu.dot_dimension_numbers<[1], [0], [0], [1], [0, 0, 1, 1], [], []>} : vector<128x128xbf16>, vector<128x128xbf16>, vector<128x128xf32> -> vector<128x128xf32>
    %c0_45 = arith.constant 0 : index
    %c0_46 = arith.constant 0 : index
    %64 = vector.load %arg16[%c0_45, %c0_46] : memref<1x128xf32, #tpu.memory_space<vmem>>, vector<1x128xf32>
    %65 = vector.broadcast %64 : vector<1x128xf32> to vector<128x128xf32>
    %66 = arith.addf %63, %65 : vector<128x128xf32>
    %cst_47 = arith.constant 1.000000e+00 : f32
    %67 = vector.broadcast %cst_47 : f32 to vector<1x128xf32>
    %68 = arith.subf %67, %29 : vector<1x128xf32>
    %69 = vector.broadcast %68 : vector<1x128xf32> to vector<128x128xf32>
    %70 = arith.mulf %69, %66 : vector<128x128xf32>
    %71 = arith.addf %28, %70 : vector<128x128xf32>
    %c0_48 = arith.constant 0 : index
    %c0_49 = arith.constant 0 : index
    %72 = vector.load %arg17[%c0_48, %c0_49] : memref<128x128xf32, #tpu.memory_space<vmem>>, vector<128x128xf32>
    tpu.vector_store %arg17[%c0_48, %c0_49], %71 {strides = array<i32>} : memref<128x128xf32, #tpu.memory_space<vmem>>, vector<128x128xf32>,
    %c0_50 = arith.constant 0 : index
    %c0_51 = arith.constant 0 : index
    %73 = memref.load %arg9[%c0_50, %c0_51] : memref<1x1xf32, #tpu.memory_space<smem>>
    %74 = vector.broadcast %73 : f32 to vector<128x1xf32>
    %75 = arith.addf %22, %74 : vector<128x1xf32>
    %c0_52 = arith.constant 0 : index
    %c0_53 = arith.constant 0 : index
    %76 = vector.load %arg18[%c0_52, %c0_53] : memref<128x1xf32, #tpu.memory_space<vmem>>, vector<128x1xf32>
    tpu.vector_store %arg18[%c0_52, %c0_53], %75 {strides = array<i32>} : memref<128x1xf32, #tpu.memory_space<vmem>>, vector<128x1xf32>,
    return
  }
  func.func @transform_0(%arg0: i32) -> (i32, i32) {
    %c0_i32 = arith.constant 0 : i32
    %c0_i32_0 = arith.constant 0 : i32
    return %arg0, %c0_i32 : i32, i32
  }
  func.func @transform_1(%arg0: i32) -> (i32, i32) {
    %c0_i32 = arith.constant 0 : i32
    %c0_i32_0 = arith.constant 0 : i32
    return %arg0, %c0_i32 : i32, i32
  }
  func.func @transform_2(%arg0: i32) -> (i32, i32) {
    %c0_i32 = arith.constant 0 : i32
    %c0_i32_0 = arith.constant 0 : i32
    %c0_i32_1 = arith.constant 0 : i32
    return %c0_i32, %c0_i32_0 : i32, i32
  }
  func.func @transform_3(%arg0: i32) -> (i32, i32) {
    %c0_i32 = arith.constant 0 : i32
    %c0_i32_0 = arith.constant 0 : i32
    %c0_i32_1 = arith.constant 0 : i32
    return %c0_i32, %c0_i32_0 : i32, i32
  }
  func.func @transform_4(%arg0: i32) -> (i32, i32) {
    %c0_i32 = arith.constant 0 : i32
    %c0_i32_0 = arith.constant 0 : i32
    %c0_i32_1 = arith.constant 0 : i32
    return %c0_i32, %c0_i32_0 : i32, i32
  }
  func.func @transform_5(%arg0: i32) -> (i32, i32) {
    %c0_i32 = arith.constant 0 : i32
    %c0_i32_0 = arith.constant 0 : i32
    %c0_i32_1 = arith.constant 0 : i32
    return %c0_i32, %c0_i32_0 : i32, i32
  }
  func.func @transform_6(%arg0: i32) -> (i32, i32) {
    %c0_i32 = arith.constant 0 : i32
    %c0_i32_0 = arith.constant 0 : i32
    %c0_i32_1 = arith.constant 0 : i32
    return %c0_i32, %c0_i32_0 : i32, i32
  }
  func.func @transform_7(%arg0: i32) -> (i32, i32) {
    %c0_i32 = arith.constant 0 : i32
    %c0_i32_0 = arith.constant 0 : i32
    %c0_i32_1 = arith.constant 0 : i32
    return %c0_i32, %c0_i32_0 : i32, i32
  }
  func.func @transform_8(%arg0: i32) -> (i32, i32) {
    %c0_i32 = arith.constant 0 : i32
    %c0_i32_0 = arith.constant 0 : i32
    %c0_i32_1 = arith.constant 0 : i32
    return %c0_i32, %c0_i32_0 : i32, i32
  }
  func.func @transform_9(%arg0: i32) -> (i32, i32) {
    %c0_i32 = arith.constant 0 : i32
    %c0_i32_0 = arith.constant 0 : i32
    %c0_i32_1 = arith.constant 0 : i32
    return %c0_i32, %c0_i32_0 : i32, i32
  }
  func.func @transform_10(%arg0: i32) -> (i32, i32) {
    %c0_i32 = arith.constant 0 : i32
    %c0_i32_0 = arith.constant 0 : i32
    %c0_i32_1 = arith.constant 0 : i32
    return %c0_i32, %c0_i32_0 : i32, i32
  }
  func.func @transform_11(%arg0: i32) -> (i32, i32) {
    %c0_i32 = arith.constant 0 : i32
    %c0_i32_0 = arith.constant 0 : i32
    %c0_i32_1 = arith.constant 0 : i32
    return %c0_i32, %c0_i32_0 : i32, i32
  }
  func.func @transform_12(%arg0: i32) -> (i32, i32, i32) {
    %c0_i32 = arith.constant 0 : i32
    %c0_i32_0 = arith.constant 0 : i32
    %c0_i32_1 = arith.constant 0 : i32
    %c0_i32_2 = arith.constant 0 : i32
    return %c0_i32, %c0_i32_0, %c0_i32_1 : i32, i32, i32
  }
  func.func @transform_13(%arg0: i32) -> (i32, i32, i32) {
    %c0_i32 = arith.constant 0 : i32
    %c0_i32_0 = arith.constant 0 : i32
    %c0_i32_1 = arith.constant 0 : i32
    %c0_i32_2 = arith.constant 0 : i32
    return %c0_i32, %c0_i32_0, %c0_i32_1 : i32, i32, i32
  }
  func.func @transform_14(%arg0: i32) -> (i32, i32) {
    %c0_i32 = arith.constant 0 : i32
    %c0_i32_0 = arith.constant 0 : i32
    %c0_i32_1 = arith.constant 0 : i32
    return %c0_i32, %c0_i32_0 : i32, i32
  }
  func.func @transform_15(%arg0: i32) -> (i32, i32) {
    %c0_i32 = arith.constant 0 : i32
    %c0_i32_0 = arith.constant 0 : i32
    %c0_i32_1 = arith.constant 0 : i32
    return %c0_i32, %c0_i32_0 : i32, i32
  }
  func.func @transform_16(%arg0: i32) -> (i32, i32) {
    %c0_i32 = arith.constant 0 : i32
    %c0_i32_0 = arith.constant 0 : i32
    return %arg0, %c0_i32 : i32, i32
  }
  func.func @transform_17(%arg0: i32) -> (i32, i32) {
    %c0_i32 = arith.constant 0 : i32
    %c0_i32_0 = arith.constant 0 : i32
    return %arg0, %c0_i32 : i32, i32
  }
}

</mosaic_0001>

<llo_original>
// kernel: tpu_custom_call.1
$region0: #{tpu_custom_call.1}
  #allocation0 [shape = 'u32[]', space=smem, size = 0x4, offset = 0x4, fixed_abs, tag = 'smem constant byte address 0x4 - core index']
  #allocation1 [shape = 'u32[144,128]{1,0:T(1,128)}', space=vmem, size = 0x12000, scoped, tag = 'internal scratch']
  #allocation2 [shape = 'f32[1,1]{1,0:T(1,128)S(6)}', space=smem, size = 0x200, scoped, tag = 'scoped memory for tpu_custom_call.1']
  %s0 = inlined_call_operand.hbm [shape: f32[512,128], index: 0, kind: input, shape index: {}]
  %s1 = inlined_call_operand.hbm [shape: f32[512,128], index: 1, kind: input, shape index: {}]
  %s2 = inlined_call_operand.hbm [shape: bf16[128,128], index: 2, kind: input, shape index: {}]
  %s3 = inlined_call_operand.vmem [shape: f32[1,128], index: 3, kind: input, shape index: {}]
  %s4 = inlined_call_operand.hbm [shape: bf16[128,256], index: 4, kind: input, shape index: {}]
  %s5 = inlined_call_operand.vmem [shape: f32[1,256], index: 5, kind: input, shape index: {}]
  %s6 = inlined_call_operand.hbm [shape: bf16[128,128], index: 6, kind: input, shape index: {}]
  %s7 = inlined_call_operand.vmem [shape: f32[1,128], index: 7, kind: input, shape index: {}]
  %s8 = inlined_call_operand.<no memory space> [shape: f32[1,1], index: 8, kind: input, shape index: {}]
  %s9 = inlined_call_operand.vmem [shape: f32[1,128], index: 9, kind: input, shape index: {}]
  %s10 = inlined_call_operand.hbm [shape: bf16[256,128], index: 10, kind: input, shape index: {}]
  %s11 = inlined_call_operand.vmem [shape: f32[1,128], index: 11, kind: input, shape index: {}]
  %s12 = inlined_call_operand.hbm [shape: bf16[2,128,128], index: 12, kind: input, shape index: {}]
  %s13 = inlined_call_operand.vmem [shape: f32[2,1,128], index: 13, kind: input, shape index: {}]
  %s14 = inlined_call_operand.hbm [shape: bf16[128,128], index: 14, kind: input, shape index: {}]
  %s15 = inlined_call_operand.vmem [shape: f32[1,128], index: 15, kind: input, shape index: {}]
  %s16 = inlined_call_operand.hbm [shape: f32[512,128], index: 16, kind: output, shape index: {0}]
  %s17 = inlined_call_operand.vmem [shape: f32[512,1], index: 17, kind: output, shape index: {1}]
  %18 = xla_tuple %s16, %s17
  %s19 = sld [smem:[#allocation0]]
  $region137: #{tpu_custom_call.1} parent=0
    _
  %s21 = ssub.s32 1, %s19
  %s22 = scalar_select 0, %s21, %s19
  %23 = sst [smem:[#allocation2]] %s8
  $region1: #{tpu_custom_call.1} parent=0
    #allocation3 [shape = 'u8[131072]{0}', space=vmem, size = 0x20000, scoped, tag = 'input window, operand 0']
    #allocation4 [shape = 's32[2]{0}', space=sflag, size = 0x8, scoped, tag = 'scoped memory for tpu_custom_call.1']
    #allocation5 [shape = 's32[2]{0}', space=sflag, size = 0x8, scoped, tag = 'scoped memory for tpu_custom_call.1']
    #allocation6 [shape = 'u8[131072]{0}', space=vmem, size = 0x20000, scoped, tag = 'input window, operand 1']
    #allocation7 [shape = 's32[2]{0}', space=sflag, size = 0x8, scoped, tag = 'scoped memory for tpu_custom_call.1']
    #allocation8 [shape = 'u8[32768]{0}', space=vmem, size = 0x8000, scoped, tag = 'input window, operand 2, single buffered']
    #allocation9 [shape = 'u8[65536]{0}', space=vmem, size = 0x10000, scoped, tag = 'input window, operand 4, single buffered']
    #allocation10 [shape = 's32[1]{0}', space=sflag, size = 0x4, scoped, tag = 'scoped memory for tpu_custom_call.1']
    #allocation11 [shape = 'u8[32768]{0}', space=vmem, size = 0x8000, scoped, tag = 'input window, operand 6, single buffered']
    #allocation12 [shape = 'u8[65536]{0}', space=vmem, size = 0x10000, scoped, tag = 'input window, operand 10, single buffered']
    #allocation13 [shape = 's32[1]{0}', space=sflag, size = 0x4, scoped, tag = 'scoped memory for tpu_custom_call.1']
    #allocation14 [shape = 'u8[65536]{0}', space=vmem, size = 0x10000, scoped, tag = 'input window, operand 12, single buffered']
    #allocation15 [shape = 'u8[32768]{0}', space=vmem, size = 0x8000, scoped, tag = 'input window, operand 14, single buffered']
    #allocation16 [shape = 's32[1]{0}', space=sflag, size = 0x4, scoped, tag = 'scoped memory for tpu_custom_call.1']
    #allocation17 [shape = 'u8[131072]{0}', space=vmem, size = 0x20000, scoped, tag = 'output window, operand 0']
    %24 = vsyncpa [#allocation4], 0
    %s25 = scalar_lea.sflag [#allocation4], 1
    %26 = vsyncpa %s25, 0
    %27 = vsyncpa [#allocation7], 0
    %s28 = scalar_lea.sflag [#allocation7], 1
    %29 = vsyncpa %s28, 0
    %30 = vsyncpa [#allocation10], 0
    %31 = vsyncpa [#allocation13], 0
    %32 = vsyncpa [#allocation16], 0
    %33 = vsyncpa [#allocation5], 0
    %s34 = scalar_lea.sflag [#allocation5], 1
    %35 = vsyncpa %s34, 0
    loop: start=0, step=1, limit=6
    $region2: #{tpu_custom_call.1} parent=1 // loop_pre_header
      _
    $region3: #{tpu_custom_call.1} parent=1 // loop_header
      %s37 = sphi 0, %s41
      %p38 = scmp.ge.s32.totalorder %s37, 6
      %s47 = sphi 0, %s49
      %s50 = sphi 0, %s47
      %s51 = sphi 0, %s50
      %s67 = sphi 0, %s51
      %s73 = sphi 0, %s75
      %s76 = sphi 0, %s73
      %s77 = sphi 0, %s76
      %s93 = sphi 0, %s77
      %s97 = sphi 0, %s97
      %s99 = sphi 0, %s97
      %s100 = sphi 0, %s99
      %s114 = sphi 0, %s100
      %s118 = sphi 0, %s118
      %s120 = sphi 0, %s118
      %s121 = sphi 0, %s120
      %s135 = sphi 0, %s121
      %s139 = sphi 0, %s139
      %s141 = sphi 0, %s139
      %s142 = sphi 0, %s141
      %s156 = sphi 0, %s142
      %s160 = sphi 0, %s160
      %s162 = sphi 0, %s160
      %s163 = sphi 0, %s162
      %s177 = sphi 0, %s163
      %s181 = sphi 0, %s181
      %s183 = sphi 0, %s181
      %s184 = sphi 0, %s183
      %s198 = sphi 0, %s184
      %s202 = sphi 0, %s202
      %s204 = sphi 0, %s202
      %s205 = sphi 0, %s204
      %s219 = sphi 0, %s205
      %s223 = sphi 0, %s223
      %s225 = sphi 0, %s223
      %s226 = sphi 0, %s225
      %s240 = sphi 0, %s226
      %s244 = sphi 0, %s244
      %s246 = sphi 0, %s244
      %s247 = sphi 0, %s246
      %s261 = sphi 0, %s247
      %s265 = sphi 0, %s265
      %s267 = sphi 0, %s265
      %s268 = sphi 0, %s267
      %s282 = sphi 0, %s268
      %s286 = sphi 0, %s286
      %s288 = sphi 0, %s286
      %s289 = sphi 0, %s288
      %s303 = sphi 0, %s289
      %s307 = sphi 0, %s307
      %s309 = sphi 0, %s307
      %s310 = sphi 0, %s309
      %s324 = sphi 0, %s310
      %s328 = sphi 0, %s328
      %s330 = sphi 0, %s328
      %s331 = sphi 0, %s330
      %s345 = sphi 0, %s331
      %s349 = sphi 0, %s349
      %s351 = sphi 0, %s349
      %s352 = sphi 0, %s351
      %s366 = sphi 0, %s352
      %s370 = sphi 0, %s370
      %s372 = sphi 0, %s370
      %s373 = sphi 0, %s372
      %s387 = sphi 0, %s373
      %s393 = sphi 0, %s395
      %s396 = sphi 0, %s393
      %s397 = sphi 0, %s396
      %s413 = sphi 0, %s397
      %s419 = sphi 0, %s421
      %s422 = sphi 0, %s419
      %s423 = sphi 0, %s422
      %s439 = sphi 0, %s423
    $region4: #{tpu_custom_call.1} parent=1 // loop_header_branch
      %40 = sbr.rel (%p38) target = $region8
    $region5: #{tpu_custom_call.1} parent=1 // loop_body
      %s42 = ssub.s32 %s37, 1
      %s43 = ssub.s32 %s37, 2
      %s44 = sadd.s32 %s37, 1
      %s45 = ssub.s32 %s37, %s44
      %p46 = scmp.eq.s32.totalorder %s45, 0
      %s48 = sadd.s32 %s47, 1
      %s49 = scalar_select %p46, %s47, %s48
      %p52 = pneg %p46
      %p53 = scmp.eq.s32.totalorder %s37, 3
      %p54 = por %p52, %p53
      %p55 = scmp.ne.s32.totalorder %s47, %s50
      %p56 = scmp.eq.s32.totalorder %s37, 0
      %p57 = por %p55, %p56
      %p58 = scmp.ne.s32.totalorder %s47, %s50
      %p59 = scmp.eq.s32.totalorder %s42, 3
      %p60 = por %p58, %p59
      %p61 = scmp.ne.s32.totalorder %s50, %s51
      %p62 = scmp.eq.s32.totalorder %s42, 0
      %p63 = por %p61, %p62
      %p64 = scmp.ne.s32.totalorder %s50, %s51
      %p65 = scmp.eq.s32.totalorder %s43, 3
      %p66 = por %p64, %p65
      %p68 = scmp.ne.s32.totalorder %s51, %s67
      %p69 = scmp.eq.s32.totalorder %s43, 0
      %p70 = por %p68, %p69
      %s71 = ssub.s32 %s37, %s44
      %p72 = scmp.eq.s32.totalorder %s71, 0
      %s74 = sadd.s32 %s73, 1
      %s75 = scalar_select %p72, %s73, %s74
      %p78 = pneg %p72
      %p79 = scmp.eq.s32.totalorder %s37, 3
      %p80 = por %p78, %p79
      %p81 = scmp.ne.s32.totalorder %s73, %s76
      %p82 = scmp.eq.s32.totalorder %s37, 0
      %p83 = por %p81, %p82
      %p84 = scmp.ne.s32.totalorder %s73, %s76
      %p85 = scmp.eq.s32.totalorder %s42, 3
      %p86 = por %p84, %p85
      %p87 = scmp.ne.s32.totalorder %s76, %s77
      %p88 = scmp.eq.s32.totalorder %s42, 0
      %p89 = por %p87, %p88
      %p90 = scmp.ne.s32.totalorder %s76, %s77
      %p91 = scmp.eq.s32.totalorder %s43, 3
      %p92 = por %p90, %p91
      %p94 = scmp.ne.s32.totalorder %s77, %s93
      %p95 = scmp.eq.s32.totalorder %s43, 0
      %p96 = por %p94, %p95
      %s98 = sadd.s32 %s97, 1
      %p101 = scmp.eq.s32.totalorder %s37, 3
      %p102 = scmp.ne.s32.totalorder %s97, %s99
      %p103 = scmp.eq.s32.totalorder %s37, 0
      %p104 = por %p102, %p103
      %p105 = scmp.ne.s32.totalorder %s97, %s99
      %p106 = scmp.eq.s32.totalorder %s42, 3
      %p107 = por %p105, %p106
      %p108 = scmp.ne.s32.totalorder %s99, %s100
      %p109 = scmp.eq.s32.totalorder %s42, 0
      %p110 = por %p108, %p109
      %p111 = scmp.ne.s32.totalorder %s99, %s100
      %p112 = scmp.eq.s32.totalorder %s43, 3
      %p113 = por %p111, %p112
      %p115 = scmp.ne.s32.totalorder %s100, %s114
      %p116 = scmp.eq.s32.totalorder %s43, 0
      %p117 = por %p115, %p116
      %s119 = sadd.s32 %s118, 1
      %p122 = scmp.eq.s32.totalorder %s37, 3
      %p123 = scmp.ne.s32.totalorder %s118, %s120
      %p124 = scmp.eq.s32.totalorder %s37, 0
      %p125 = por %p123, %p124
      %p126 = scmp.ne.s32.totalorder %s118, %s120
      %p127 = scmp.eq.s32.totalorder %s42, 3
      %p128 = por %p126, %p127
      %p129 = scmp.ne.s32.totalorder %s120, %s121
      %p130 = scmp.eq.s32.totalorder %s42, 0
      %p131 = por %p129, %p130
      %p132 = scmp.ne.s32.totalorder %s120, %s121
      %p133 = scmp.eq.s32.totalorder %s43, 3
      %p134 = por %p132, %p133
      %p136 = scmp.ne.s32.totalorder %s121, %s135
      %p137 = scmp.eq.s32.totalorder %s43, 0
      %p138 = por %p136, %p137
      %s140 = sadd.s32 %s139, 1
      %p143 = scmp.eq.s32.totalorder %s37, 3
      %p144 = scmp.ne.s32.totalorder %s139, %s141
      %p145 = scmp.eq.s32.totalorder %s37, 0
      %p146 = por %p144, %p145
      %p147 = scmp.ne.s32.totalorder %s139, %s141
      %p148 = scmp.eq.s32.totalorder %s42, 3
      %p149 = por %p147, %p148
      %p150 = scmp.ne.s32.totalorder %s141, %s142
      %p151 = scmp.eq.s32.totalorder %s42, 0
      %p152 = por %p150, %p151
      %p153 = scmp.ne.s32.totalorder %s141, %s142
      %p154 = scmp.eq.s32.totalorder %s43, 3
      %p155 = por %p153, %p154
      %p157 = scmp.ne.s32.totalorder %s142, %s156
      %p158 = scmp.eq.s32.totalorder %s43, 0
      %p159 = por %p157, %p158
      %s161 = sadd.s32 %s160, 1
      %p164 = scmp.eq.s32.totalorder %s37, 3
      %p165 = scmp.ne.s32.totalorder %s160, %s162
      %p166 = scmp.eq.s32.totalorder %s37, 0
      %p167 = por %p165, %p166
      %p168 = scmp.ne.s32.totalorder %s160, %s162
      %p169 = scmp.eq.s32.totalorder %s42, 3
      %p170 = por %p168, %p169
      %p171 = scmp.ne.s32.totalorder %s162, %s163
      %p172 = scmp.eq.s32.totalorder %s42, 0
      %p173 = por %p171, %p172
      %p174 = scmp.ne.s32.totalorder %s162, %s163
      %p175 = scmp.eq.s32.totalorder %s43, 3
      %p176 = por %p174, %p175
      %p178 = scmp.ne.s32.totalorder %s163, %s177
      %p179 = scmp.eq.s32.totalorder %s43, 0
      %p180 = por %p178, %p179
      %s182 = sadd.s32 %s181, 1
      %p185 = scmp.eq.s32.totalorder %s37, 3
      %p186 = scmp.ne.s32.totalorder %s181, %s183
      %p187 = scmp.eq.s32.totalorder %s37, 0
      %p188 = por %p186, %p187
      %p189 = scmp.ne.s32.totalorder %s181, %s183
      %p190 = scmp.eq.s32.totalorder %s42, 3
      %p191 = por %p189, %p190
      %p192 = scmp.ne.s32.totalorder %s183, %s184
      %p193 = scmp.eq.s32.totalorder %s42, 0
      %p194 = por %p192, %p193
      %p195 = scmp.ne.s32.totalorder %s183, %s184
      %p196 = scmp.eq.s32.totalorder %s43, 3
      %p197 = por %p195, %p196
      %p199 = scmp.ne.s32.totalorder %s184, %s198
      %p200 = scmp.eq.s32.totalorder %s43, 0
      %p201 = por %p199, %p200
      %s203 = sadd.s32 %s202, 1
      %p206 = scmp.eq.s32.totalorder %s37, 3
      %p207 = scmp.ne.s32.totalorder %s202, %s204
      %p208 = scmp.eq.s32.totalorder %s37, 0
      %p209 = por %p207, %p208
      %p210 = scmp.ne.s32.totalorder %s202, %s204
      %p211 = scmp.eq.s32.totalorder %s42, 3
      %p212 = por %p210, %p211
      %p213 = scmp.ne.s32.totalorder %s204, %s205
      %p214 = scmp.eq.s32.totalorder %s42, 0
      %p215 = por %p213, %p214
      %p216 = scmp.ne.s32.totalorder %s204, %s205
      %p217 = scmp.eq.s32.totalorder %s43, 3
      %p218 = por %p216, %p217
      %p220 = scmp.ne.s32.totalorder %s205, %s219
      %p221 = scmp.eq.s32.totalorder %s43, 0
      %p222 = por %p220, %p221
      %s224 = sadd.s32 %s223, 1
      %p227 = scmp.eq.s32.totalorder %s37, 3
      %p228 = scmp.ne.s32.totalorder %s223, %s225
      %p229 = scmp.eq.s32.totalorder %s37, 0
      %p230 = por %p228, %p229
      %p231 = scmp.ne.s32.totalorder %s223, %s225
      %p232 = scmp.eq.s32.totalorder %s42, 3
      %p233 = por %p231, %p232
      %p234 = scmp.ne.s32.totalorder %s225, %s226
      %p235 = scmp.eq.s32.totalorder %s42, 0
      %p236 = por %p234, %p235
      %p237 = scmp.ne.s32.totalorder %s225, %s226
      %p238 = scmp.eq.s32.totalorder %s43, 3
      %p239 = por %p237, %p238
      %p241 = scmp.ne.s32.totalorder %s226, %s240
      %p242 = scmp.eq.s32.totalorder %s43, 0
      %p243 = por %p241, %p242
      %s245 = sadd.s32 %s244, 1
      %p248 = scmp.eq.s32.totalorder %s37, 3
      %p249 = scmp.ne.s32.totalorder %s244, %s246
      %p250 = scmp.eq.s32.totalorder %s37, 0
      %p251 = por %p249, %p250
      %p252 = scmp.ne.s32.totalorder %s244, %s246
      %p253 = scmp.eq.s32.totalorder %s42, 3
      %p254 = por %p252, %p253
      %p255 = scmp.ne.s32.totalorder %s246, %s247
      %p256 = scmp.eq.s32.totalorder %s42, 0
      %p257 = por %p255, %p256
      %p258 = scmp.ne.s32.totalorder %s246, %s247
      %p259 = scmp.eq.s32.totalorder %s43, 3
      %p260 = por %p258, %p259
      %p262 = scmp.ne.s32.totalorder %s247, %s261
      %p263 = scmp.eq.s32.totalorder %s43, 0
      %p264 = por %p262, %p263
      %s266 = sadd.s32 %s265, 1
      %p269 = scmp.eq.s32.totalorder %s37, 3
      %p270 = scmp.ne.s32.totalorder %s265, %s267
      %p271 = scmp.eq.s32.totalorder %s37, 0
      %p272 = por %p270, %p271
      %p273 = scmp.ne.s32.totalorder %s265, %s267
      %p274 = scmp.eq.s32.totalorder %s42, 3
      %p275 = por %p273, %p274
      %p276 = scmp.ne.s32.totalorder %s267, %s268
      %p277 = scmp.eq.s32.totalorder %s42, 0
      %p278 = por %p276, %p277
      %p279 = scmp.ne.s32.totalorder %s267, %s268
      %p280 = scmp.eq.s32.totalorder %s43, 3
      %p281 = por %p279, %p280
      %p283 = scmp.ne.s32.totalorder %s268, %s282
      %p284 = scmp.eq.s32.totalorder %s43, 0
      %p285 = por %p283, %p284
      %s287 = sadd.s32 %s286, 1
      %p290 = scmp.eq.s32.totalorder %s37, 3
      %p291 = scmp.ne.s32.totalorder %s286, %s288
      %p292 = scmp.eq.s32.totalorder %s37, 0
      %p293 = por %p291, %p292
      %p294 = scmp.ne.s32.totalorder %s286, %s288
      %p295 = scmp.eq.s32.totalorder %s42, 3
      %p296 = por %p294, %p295
      %p297 = scmp.ne.s32.totalorder %s288, %s289
      %p298 = scmp.eq.s32.totalorder %s42, 0
      %p299 = por %p297, %p298
      %p300 = scmp.ne.s32.totalorder %s288, %s289
      %p301 = scmp.eq.s32.totalorder %s43, 3
      %p302 = por %p300, %p301
      %p304 = scmp.ne.s32.totalorder %s289, %s303
      %p305 = scmp.eq.s32.totalorder %s43, 0
      %p306 = por %p304, %p305
      %s308 = sadd.s32 %s307, 1
      %p311 = scmp.eq.s32.totalorder %s37, 3
      %p312 = scmp.ne.s32.totalorder %s307, %s309
      %p313 = scmp.eq.s32.totalorder %s37, 0
      %p314 = por %p312, %p313
      %p315 = scmp.ne.s32.totalorder %s307, %s309
      %p316 = scmp.eq.s32.totalorder %s42, 3
      %p317 = por %p315, %p316
      %p318 = scmp.ne.s32.totalorder %s309, %s310
      %p319 = scmp.eq.s32.totalorder %s42, 0
      %p320 = por %p318, %p319
      %p321 = scmp.ne.s32.totalorder %s309, %s310
      %p322 = scmp.eq.s32.totalorder %s43, 3
      %p323 = por %p321, %p322
      %p325 = scmp.ne.s32.totalorder %s310, %s324
      %p326 = scmp.eq.s32.totalorder %s43, 0
      %p327 = por %p325, %p326
      %s329 = sadd.s32 %s328, 1
      %p332 = scmp.eq.s32.totalorder %s37, 3
      %p333 = scmp.ne.s32.totalorder %s328, %s330
      %p334 = scmp.eq.s32.totalorder %s37, 0
      %p335 = por %p333, %p334
      %p336 = scmp.ne.s32.totalorder %s328, %s330
      %p337 = scmp.eq.s32.totalorder %s42, 3
      %p338 = por %p336, %p337
      %p339 = scmp.ne.s32.totalorder %s330, %s331
      %p340 = scmp.eq.s32.totalorder %s42, 0
      %p341 = por %p339, %p340
      %p342 = scmp.ne.s32.totalorder %s330, %s331
      %p343 = scmp.eq.s32.totalorder %s43, 3
      %p344 = por %p342, %p343
      %p346 = scmp.ne.s32.totalorder %s331, %s345
      %p347 = scmp.eq.s32.totalorder %s43, 0
      %p348 = por %p346, %p347
      %s350 = sadd.s32 %s349, 1
      %p353 = scmp.eq.s32.totalorder %s37, 3
      %p354 = scmp.ne.s32.totalorder %s349, %s351
      %p355 = scmp.eq.s32.totalorder %s37, 0
      %p356 = por %p354, %p355
      %p357 = scmp.ne.s32.totalorder %s349, %s351
      %p358 = scmp.eq.s32.totalorder %s42, 3
      %p359 = por %p357, %p358
      %p360 = scmp.ne.s32.totalorder %s351, %s352
      %p361 = scmp.eq.s32.totalorder %s42, 0
      %p362 = por %p360, %p361
      %p363 = scmp.ne.s32.totalorder %s351, %s352
      %p364 = scmp.eq.s32.totalorder %s43, 3
      %p365 = por %p363, %p364
      %p367 = scmp.ne.s32.totalorder %s352, %s366
      %p368 = scmp.eq.s32.totalorder %s43, 0
      %p369 = por %p367, %p368
      %s371 = sadd.s32 %s370, 1
      %p374 = scmp.eq.s32.totalorder %s37, 3
      %p375 = scmp.ne.s32.totalorder %s370, %s372
      %p376 = scmp.eq.s32.totalorder %s37, 0
      %p377 = por %p375, %p376
      %p378 = scmp.ne.s32.totalorder %s370, %s372
      %p379 = scmp.eq.s32.totalorder %s42, 3
      %p380 = por %p378, %p379
      %p381 = scmp.ne.s32.totalorder %s372, %s373
      %p382 = scmp.eq.s32.totalorder %s42, 0
      %p383 = por %p381, %p382
      %p384 = scmp.ne.s32.totalorder %s372, %s373
      %p385 = scmp.eq.s32.totalorder %s43, 3
      %p386 = por %p384, %p385
      %p388 = scmp.ne.s32.totalorder %s373, %s387
      %p389 = scmp.eq.s32.totalorder %s43, 0
      %p390 = por %p388, %p389
      %s391 = ssub.s32 %s37, %s44
      %p392 = scmp.eq.s32.totalorder %s391, 0
      %s394 = sadd.s32 %s393, 1
      %s395 = scalar_select %p392, %s393, %s394
      %p398 = pneg %p392
      %p399 = scmp.eq.s32.totalorder %s37, 3
      %p400 = por %p398, %p399
      %p401 = scmp.ne.s32.totalorder %s393, %s396
      %p402 = scmp.eq.s32.totalorder %s37, 0
      %p403 = por %p401, %p402
      %p404 = scmp.ne.s32.totalorder %s393, %s396
      %p405 = scmp.eq.s32.totalorder %s42, 3
      %p406 = por %p404, %p405
      %p407 = scmp.ne.s32.totalorder %s396, %s397
      %p408 = scmp.eq.s32.totalorder %s42, 0
      %p409 = por %p407, %p408
      %p410 = scmp.ne.s32.totalorder %s396, %s397
      %p411 = scmp.eq.s32.totalorder %s43, 3
      %p412 = por %p410, %p411
      %p414 = scmp.ne.s32.totalorder %s397, %s413
      %p415 = scmp.eq.s32.totalorder %s43, 0
      %p416 = por %p414, %p415
      %s417 = ssub.s32 %s37, %s44
      %p418 = scmp.eq.s32.totalorder %s417, 0
      %s420 = sadd.s32 %s419, 1
      %s421 = scalar_select %p418, %s419, %s420
      %p424 = pneg %p418
      %p425 = scmp.eq.s32.totalorder %s37, 3
      %p426 = por %p424, %p425
      %p427 = scmp.ne.s32.totalorder %s419, %s422
      %p428 = scmp.eq.s32.totalorder %s37, 0
      %p429 = por %p427, %p428
      %p430 = scmp.ne.s32.totalorder %s419, %s422
      %p431 = scmp.eq.s32.totalorder %s42, 3
      %p432 = por %p430, %p431
      %p433 = scmp.ne.s32.totalorder %s422, %s423
      %p434 = scmp.eq.s32.totalorder %s42, 0
      %p435 = por %p433, %p434
      %p436 = scmp.ne.s32.totalorder %s422, %s423
      %p437 = scmp.eq.s32.totalorder %s43, 3
      %p438 = por %p436, %p437
      %p440 = scmp.ne.s32.totalorder %s423, %s439
      %p441 = scmp.eq.s32.totalorder %s43, 0
      %p442 = por %p440, %p441
      %p443 = scmp.le.s32.totalorder 1, %s37
      %p444 = scmp.lt.s32.totalorder %s37, 5
      %p445 = pnand %p443, %p444
      %p446 = pneg %p445
      // Predicated region
      $region9: #{tpu_custom_call.1} parent=5 // pred_check
        _
      $region10: #{tpu_custom_call.1} parent=5 // pred_check_branch
        %448 = sbr.rel (%p445) target = $region12
      $region11: #{tpu_custom_call.1} parent=5 // pred_region
        %s449 = ssub.s32 %s37, 1
        // Predicated region
        $region13: #{tpu_custom_call.1} parent=11 // pred_check
          %p450 = pneg %p110
        $region14: #{tpu_custom_call.1} parent=11 // pred_check_branch
          %452 = sbr.rel (%p450) target = $region16
        $region15: #{tpu_custom_call.1} parent=11 // pred_region
          %s454 = ssub.s32 1024, 1024
          %455 = vsyncadd [#allocation7], %s454
          %s456 = sshll.u32 [#allocation8], 4
          %s457 = int_to_ptr.vmem [resolvable:$true] %s456
          %462 = dma.hbm_to_vmem [thread:$0]  %s2, 1024, %s457, [#allocation7], 64, 64, 4
        $region16: #{tpu_custom_call.1} parent=11 // pred_fallthru
          _
        // Predicated region
        $region17: #{tpu_custom_call.1} parent=11 // pred_check
          %p463 = pneg %p131
        $region18: #{tpu_custom_call.1} parent=11 // pred_check_branch
          %465 = sbr.rel (%p463) target = $region20
        $region19: #{tpu_custom_call.1} parent=11 // pred_region
          _
        $region20: #{tpu_custom_call.1} parent=11 // pred_fallthru
          _
        // Predicated region
        $region21: #{tpu_custom_call.1} parent=11 // pred_check
          %p466 = pneg %p152
        $region22: #{tpu_custom_call.1} parent=11 // pred_check_branch
          %468 = sbr.rel (%p466) target = $region24
        $region23: #{tpu_custom_call.1} parent=11 // pred_region
          %s470 = ssub.s32 2048, 2048
          %471 = vsyncadd [#allocation10], %s470
          %s472 = sshll.u32 [#allocation9], 4
          %s473 = int_to_ptr.vmem [resolvable:$true] %s472
          %478 = dma.hbm_to_vmem [thread:$0]  %s4, 2048, %s473, [#allocation10], 128, 128, 8
        $region24: #{tpu_custom_call.1} parent=11 // pred_fallthru
          _
        // Predicated region
        $region25: #{tpu_custom_call.1} parent=11 // pred_check
          %p479 = pneg %p173
        $region26: #{tpu_custom_call.1} parent=11 // pred_check_branch
          %481 = sbr.rel (%p479) target = $region28
        $region27: #{tpu_custom_call.1} parent=11 // pred_region
          _
        $region28: #{tpu_custom_call.1} parent=11 // pred_fallthru
          _
        // Predicated region
        $region29: #{tpu_custom_call.1} parent=11 // pred_check
          %p482 = pneg %p194
        $region30: #{tpu_custom_call.1} parent=11 // pred_check_branch
          %484 = sbr.rel (%p482) target = $region32
        $region31: #{tpu_custom_call.1} parent=11 // pred_region
          %s486 = ssub.s32 1024, 1024
          %487 = vsyncadd [#allocation10], %s486
          %s488 = sshll.u32 [#allocation11], 4
          %s489 = int_to_ptr.vmem [resolvable:$true] %s488
          %494 = dma.hbm_to_vmem [thread:$0]  %s6, 1024, %s489, [#allocation10], 64, 64, 4
        $region32: #{tpu_custom_call.1} parent=11 // pred_fallthru
          _
        // Predicated region
        $region33: #{tpu_custom_call.1} parent=11 // pred_check
          %p495 = pneg %p215
        $region34: #{tpu_custom_call.1} parent=11 // pred_check_branch
          %497 = sbr.rel (%p495) target = $region36
        $region35: #{tpu_custom_call.1} parent=11 // pred_region
          _
        $region36: #{tpu_custom_call.1} parent=11 // pred_fallthru
          _
        // Predicated region
        $region37: #{tpu_custom_call.1} parent=11 // pred_check
          %p498 = pneg %p236
        $region38: #{tpu_custom_call.1} parent=11 // pred_check_branch
          %500 = sbr.rel (%p498) target = $region40
        $region39: #{tpu_custom_call.1} parent=11 // pred_region
          _
        $region40: #{tpu_custom_call.1} parent=11 // pred_fallthru
          _
        // Predicated region
        $region41: #{tpu_custom_call.1} parent=11 // pred_check
          %p501 = pneg %p257
        $region42: #{tpu_custom_call.1} parent=11 // pred_check_branch
          %503 = sbr.rel (%p501) target = $region44
        $region43: #{tpu_custom_call.1} parent=11 // pred_region
          _
        $region44: #{tpu_custom_call.1} parent=11 // pred_fallthru
          _
        // Predicated region
        $region45: #{tpu_custom_call.1} parent=11 // pred_check
          %p504 = pneg %p278
        $region46: #{tpu_custom_call.1} parent=11 // pred_check_branch
          %506 = sbr.rel (%p504) target = $region48
        $region47: #{tpu_custom_call.1} parent=11 // pred_region
          %s508 = ssub.s32 2048, 2048
          %509 = vsyncadd [#allocation13], %s508
          %s510 = sshll.u32 [#allocation12], 4
          %s511 = int_to_ptr.vmem [resolvable:$true] %s510
          %516 = dma.hbm_to_vmem [thread:$0]  %s10, 2048, %s511, [#allocation13], 64, 64, 4
        $region48: #{tpu_custom_call.1} parent=11 // pred_fallthru
          _
        // Predicated region
        $region49: #{tpu_custom_call.1} parent=11 // pred_check
          %p517 = pneg %p299
        $region50: #{tpu_custom_call.1} parent=11 // pred_check_branch
          %519 = sbr.rel (%p517) target = $region52
        $region51: #{tpu_custom_call.1} parent=11 // pred_region
          _
        $region52: #{tpu_custom_call.1} parent=11 // pred_fallthru
          _
        // Predicated region
        $region53: #{tpu_custom_call.1} parent=11 // pred_check
          %p520 = pneg %p320
        $region54: #{tpu_custom_call.1} parent=11 // pred_check_branch
          %522 = sbr.rel (%p520) target = $region56
        $region55: #{tpu_custom_call.1} parent=11 // pred_region
          %s524 = ssub.s32 2048, 2048
          %525 = vsyncadd [#allocation13], %s524
          %s526 = sshll.u32 [#allocation14], 4
          %s527 = int_to_ptr.vmem [resolvable:$true] %s526
          %532 = dma.hbm_to_vmem [thread:$0]  %s12, 2048, %s527, [#allocation13], 64, 64, 4
        $region56: #{tpu_custom_call.1} parent=11 // pred_fallthru
          _
        // Predicated region
        $region57: #{tpu_custom_call.1} parent=11 // pred_check
          %p533 = pneg %p341
        $region58: #{tpu_custom_call.1} parent=11 // pred_check_branch
          %535 = sbr.rel (%p533) target = $region60
        $region59: #{tpu_custom_call.1} parent=11 // pred_region
          _
        $region60: #{tpu_custom_call.1} parent=11 // pred_fallthru
          _
        // Predicated region
        $region61: #{tpu_custom_call.1} parent=11 // pred_check
          %p536 = pneg %p362
        $region62: #{tpu_custom_call.1} parent=11 // pred_check_branch
          %538 = sbr.rel (%p536) target = $region64
        $region63: #{tpu_custom_call.1} parent=11 // pred_region
          %s540 = ssub.s32 1024, 1024
          %541 = vsyncadd [#allocation16], %s540
          %s542 = sshll.u32 [#allocation15], 4
          %s543 = int_to_ptr.vmem [resolvable:$true] %s542
          %548 = dma.hbm_to_vmem [thread:$0]  %s14, 1024, %s543, [#allocation16], 64, 64, 4
        $region64: #{tpu_custom_call.1} parent=11 // pred_fallthru
          _
        // Predicated region
        $region65: #{tpu_custom_call.1} parent=11 // pred_check
          %p549 = pneg %p383
        $region66: #{tpu_custom_call.1} parent=11 // pred_check_branch
          %551 = sbr.rel (%p549) target = $region68
        $region67: #{tpu_custom_call.1} parent=11 // pred_region
          _
        $region68: #{tpu_custom_call.1} parent=11 // pred_fallthru
          _
      $region12: #{tpu_custom_call.1} parent=5 // pred_fallthru
        _
      %p552 = scmp.lt.s32.totalorder %s37, 4
      // Predicated region
      $region69: #{tpu_custom_call.1} parent=5 // pred_check
        %p553 = pneg %p552
      $region70: #{tpu_custom_call.1} parent=5 // pred_check_branch
        %555 = sbr.rel (%p553) target = $region72
      $region71: #{tpu_custom_call.1} parent=5 // pred_region
        // Predicated region
        $region73: #{tpu_custom_call.1} parent=71 // pred_check
          %p556 = pneg %p57
        $region74: #{tpu_custom_call.1} parent=71 // pred_check_branch
          %558 = sbr.rel (%p556) target = $region76
        $region75: #{tpu_custom_call.1} parent=71 // pred_region
          %s559 = sand.u32 %s47, 1
          %s560 = scalar_lea.sflag [#allocation4], %s559
          %s561 = sand.u32 %s47, 1
          %s562 = smul.addr %s561, 128
          %s563 = scalar_lea.vmem [#allocation3], %s562
          %s564 = smul.u32 16, %s37
          %s566 = ssub.s32 2048, 2048
          %567 = vsyncadd %s560, %s566
          %s568 = smul.addr %s564, 128
          %s569 = scalar_lea.hbm %s0, %s568
          %s570 = sshll.u32 %s563, 4
          %s571 = int_to_ptr.vmem [resolvable:$true] %s570
          %576 = dma.hbm_to_vmem [thread:$0]  %s569, 2048, %s571, %s560, 128, 128, 8
        $region76: #{tpu_custom_call.1} parent=71 // pred_fallthru
          _
        // Predicated region
        $region77: #{tpu_custom_call.1} parent=71 // pred_check
          %p577 = pneg %p83
        $region78: #{tpu_custom_call.1} parent=71 // pred_check_branch
          %579 = sbr.rel (%p577) target = $region80
        $region79: #{tpu_custom_call.1} parent=71 // pred_region
          %s580 = sand.u32 %s37, 1
          %s581 = scalar_lea.sflag [#allocation7], %s580
          %s582 = sand.u32 %s73, 1
          %s583 = smul.addr %s582, 128
          %s584 = scalar_lea.vmem [#allocation6], %s583
          %s585 = smul.u32 16, %s37
          %s587 = ssub.s32 2048, 2048
          %588 = vsyncadd %s581, %s587
          %s589 = smul.addr %s585, 128
          %s590 = scalar_lea.hbm %s1, %s589
          %s591 = sshll.u32 %s584, 4
          %s592 = int_to_ptr.vmem [resolvable:$true] %s591
          %597 = dma.hbm_to_vmem [thread:$0]  %s590, 2048, %s592, %s581, 128, 128, 8
        $region80: #{tpu_custom_call.1} parent=71 // pred_fallthru
          _
      $region72: #{tpu_custom_call.1} parent=5 // pred_fallthru
        _
      %p598 = scmp.le.s32.totalorder 1, %s37
      %p599 = scmp.lt.s32.totalorder %s37, 5
      %p600 = pnand %p598, %p599
      %p601 = pneg %p600
      // Predicated region
      $region81: #{tpu_custom_call.1} parent=5 // pred_check
        _
      $region82: #{tpu_custom_call.1} parent=5 // pred_check_branch
        %603 = sbr.rel (%p600) target = $region84
      $region83: #{tpu_custom_call.1} parent=5 // pred_region
        %s604 = ssub.s32 %s37, 1
        %s605 = sand.u32 %s50, 1
        %s606 = scalar_lea.sflag [#allocation4], %s605
        %s607 = sand.u32 %s50, 1
        %s608 = smul.addr %s607, 128
        %s609 = scalar_lea.vmem [#allocation3], %s608
        // Predicated region
        $region85: #{tpu_custom_call.1} parent=83 // pred_check
          %p610 = pneg %p63
        $region86: #{tpu_custom_call.1} parent=83 // pred_check_branch
          %612 = sbr.rel (%p610) target = $region88
        $region87: #{tpu_custom_call.1} parent=83 // pred_region
          %613 = dma.done %s606, 2048
        $region88: #{tpu_custom_call.1} parent=83 // pred_fallthru
          _
        %s614 = sand.u32 %s42, 1
        %s615 = scalar_lea.sflag [#allocation7], %s614
        %s616 = sand.u32 %s76, 1
        %s617 = smul.addr %s616, 128
        %s618 = scalar_lea.vmem [#allocation6], %s617
        // Predicated region
        $region89: #{tpu_custom_call.1} parent=83 // pred_check
          %p619 = pneg %p89
        $region90: #{tpu_custom_call.1} parent=83 // pred_check_branch
          %621 = sbr.rel (%p619) target = $region92
        $region91: #{tpu_custom_call.1} parent=83 // pred_region
          %622 = dma.done %s615, 2048
        $region92: #{tpu_custom_call.1} parent=83 // pred_fallthru
          _
        // Predicated region
        $region93: #{tpu_custom_call.1} parent=83 // pred_check
          %p623 = pneg %p110
        $region94: #{tpu_custom_call.1} parent=83 // pred_check_branch
          %625 = sbr.rel (%p623) target = $region96
        $region95: #{tpu_custom_call.1} parent=83 // pred_region
          %626 = dma.done [#allocation7], 1024
        $region96: #{tpu_custom_call.1} parent=83 // pred_fallthru
          _
        // Predicated region
        $region97: #{tpu_custom_call.1} parent=83 // pred_check
          %p627 = pneg %p152
        $region98: #{tpu_custom_call.1} parent=83 // pred_check_branch
          %629 = sbr.rel (%p627) target = $region100
        $region99: #{tpu_custom_call.1} parent=83 // pred_region
          %630 = dma.done [#allocation10], 2048
        $region100: #{tpu_custom_call.1} parent=83 // pred_fallthru
          _
        // Predicated region
        $region101: #{tpu_custom_call.1} parent=83 // pred_check
          %p631 = pneg %p194
        $region102: #{tpu_custom_call.1} parent=83 // pred_check_branch
          %633 = sbr.rel (%p631) target = $region104
        $region103: #{tpu_custom_call.1} parent=83 // pred_region
          %634 = dma.done [#allocation10], 1024
        $region104: #{tpu_custom_call.1} parent=83 // pred_fallthru
          _
        // Predicated region
        $region105: #{tpu_custom_call.1} parent=83 // pred_check
          %p635 = pneg %p278
        $region106: #{tpu_custom_call.1} parent=83 // pred_check_branch
          %637 = sbr.rel (%p635) target = $region108
        $region107: #{tpu_custom_call.1} parent=83 // pred_region
          %638 = dma.done [#allocation13], 2048
        $region108: #{tpu_custom_call.1} parent=83 // pred_fallthru
          _
        // Predicated region
        $region109: #{tpu_custom_call.1} parent=83 // pred_check
          %p639 = pneg %p320
        $region110: #{tpu_custom_call.1} parent=83 // pred_check_branch
          %641 = sbr.rel (%p639) target = $region112
        $region111: #{tpu_custom_call.1} parent=83 // pred_region
          %642 = dma.done [#allocation13], 2048
        $region112: #{tpu_custom_call.1} parent=83 // pred_fallthru
          _
        // Predicated region
        $region113: #{tpu_custom_call.1} parent=83 // pred_check
          %p643 = pneg %p362
        $region114: #{tpu_custom_call.1} parent=83 // pred_check_branch
          %645 = sbr.rel (%p643) target = $region116
        $region115: #{tpu_custom_call.1} parent=83 // pred_region
          %646 = dma.done [#allocation16], 1024
        $region116: #{tpu_custom_call.1} parent=83 // pred_fallthru
          _
        %s647 = sand.u32 %s50, 1
        %s648 = scalar_lea.sflag [#allocation4], %s647
        %s649 = sand.u32 %s50, 1
        %s650 = smul.addr %s649, 128
        %s651 = scalar_lea.vmem [#allocation3], %s650
        %p652 = pneg %p63
        %p653 = pneg %p60
        %s654 = sand.u32 %s42, 1
        %s655 = scalar_lea.sflag [#allocation7], %s654
        %s656 = sand.u32 %s76, 1
        %s657 = smul.addr %s656, 128
        %s658 = scalar_lea.vmem [#allocation6], %s657
        %p659 = pneg %p89
        %p660 = pneg %p86
        %p661 = pneg %p110
        %p662 = pneg %p107
        %p663 = pneg %p131
        %p664 = pneg %p128
        %p665 = pneg %p152
        %p666 = pneg %p149
        %p667 = pneg %p173
        %p668 = pneg %p170
        %p669 = pneg %p194
        %p670 = pneg %p191
        %p671 = pneg %p215
        %p672 = pneg %p212
        %p673 = pneg %p236
        %p674 = pneg %p233
        %p675 = pneg %p257
        %p676 = pneg %p254
        %p677 = pneg %p278
        %p678 = pneg %p275
        %p679 = pneg %p299
        %p680 = pneg %p296
        %p681 = pneg %p320
        %p682 = pneg %p317
        %p683 = pneg %p341
        %p684 = pneg %p338
        %p685 = pneg %p362
        %p686 = pneg %p359
        %p687 = pneg %p383
        %p688 = pneg %p380
        %p689 = pneg %p409
        %p690 = pneg %p406
        %s691 = sand.u32 %s396, 1
        %s692 = scalar_lea.sflag [#allocation5], %s691
        %s693 = sand.u32 %s396, 1
        %s694 = smul.addr %s693, 128
        %s695 = scalar_lea.vmem [#allocation17], %s694
        %p696 = pneg %p435
        %p697 = pneg %p432
        %s698 = smul.u32 16, %s42
        %p699 = scmp.lt.s32.totalorder %s698, 63
        %s700 = scalar_select %p699, %s698, 63
        %s701 = smul.addr %s700, 8
        %s702 = scalar_lea.vmem %s17, %s701
        %s703 = smul.u32 16, %s42
        %s704 = smul.u32 16, %s42
        %s705 = smul.u32 16, %s42
        %s706 = smul.u32 16, %s42
        %p707 = scmp.lt.s32.totalorder %s706, 63
        %s708 = scalar_select %p707, %s706, 63
        %s709 = smul.addr %s708, 8
        %s710 = scalar_lea.vmem %s17, %s709
        %s711 = smul.u32 16, %s42
        %v713 = vld [vmem:[%s609] sm:$0xff]
        %v714 = vld [vmem:[%s609 + $0x8] sm:$0xff]
        %v715 = vld [vmem:[%s609 + $0x10] sm:$0xff]
        %v716 = vld [vmem:[%s609 + $0x18] sm:$0xff]
        %v717 = vld [vmem:[%s609 + $0x20] sm:$0xff]
        %v718 = vld [vmem:[%s609 + $0x28] sm:$0xff]
        %v719 = vld [vmem:[%s609 + $0x30] sm:$0xff]
        %v720 = vld [vmem:[%s609 + $0x38] sm:$0xff]
        %v721 = vld [vmem:[%s609 + $0x40] sm:$0xff]
        %v722 = vld [vmem:[%s609 + $0x48] sm:$0xff]
        %v723 = vld [vmem:[%s609 + $0x50] sm:$0xff]
        %v724 = vld [vmem:[%s609 + $0x58] sm:$0xff]
        %v725 = vld [vmem:[%s609 + $0x60] sm:$0xff]
        %v726 = vld [vmem:[%s609 + $0x68] sm:$0xff]
        %v727 = vld [vmem:[%s609 + $0x70] sm:$0xff]
        %v728 = vld [vmem:[%s609 + $0x78] sm:$0xff]
        %v729 = vld [vmem:[%s618] sm:$0xff]
        %v730 = vld [vmem:[%s618 + $0x8] sm:$0xff]
        %v731 = vld [vmem:[%s618 + $0x10] sm:$0xff]
        %v732 = vld [vmem:[%s618 + $0x18] sm:$0xff]
        %v733 = vld [vmem:[%s618 + $0x20] sm:$0xff]
        %v734 = vld [vmem:[%s618 + $0x28] sm:$0xff]
        %v735 = vld [vmem:[%s618 + $0x30] sm:$0xff]
        %v736 = vld [vmem:[%s618 + $0x38] sm:$0xff]
        %v737 = vld [vmem:[%s618 + $0x40] sm:$0xff]
        %v738 = vld [vmem:[%s618 + $0x48] sm:$0xff]
        %v739 = vld [vmem:[%s618 + $0x50] sm:$0xff]
        %v740 = vld [vmem:[%s618 + $0x58] sm:$0xff]
        %v741 = vld [vmem:[%s618 + $0x60] sm:$0xff]
        %v742 = vld [vmem:[%s618 + $0x68] sm:$0xff]
        %v743 = vld [vmem:[%s618 + $0x70] sm:$0xff]
        %v744 = vld [vmem:[%s618 + $0x78] sm:$0xff]
        %v745 = vpack.c.bf16 %v730, %v729
        %v746 = vpack.c.bf16 %v732, %v731
        %v747 = vpack.c.bf16 %v734, %v733
        %v748 = vpack.c.bf16 %v736, %v735
        %v749 = vpack.c.bf16 %v738, %v737
        %v750 = vpack.c.bf16 %v740, %v739
        %v751 = vpack.c.bf16 %v742, %v741
        %v752 = vpack.c.bf16 %v744, %v743
        %v753 = vld [vmem:[#allocation8] sm:$0xf]
        %v754 = vld [vmem:[#allocation8 + $0x4] sm:$0xf]
        %v755 = vld [vmem:[#allocation8 + $0x8] sm:$0xf]
        %v756 = vld [vmem:[#allocation8 + $0xc] sm:$0xf]
        %v757 = vld [vmem:[#allocation8 + $0x10] sm:$0xf]
        %v758 = vld [vmem:[#allocation8 + $0x14] sm:$0xf]
        %v759 = vld [vmem:[#allocation8 + $0x18] sm:$0xf]
        %v760 = vld [vmem:[#allocation8 + $0x1c] sm:$0xf]
        %v761 = vld [vmem:[#allocation8 + $0x20] sm:$0xf]
        %v762 = vld [vmem:[#allocation8 + $0x24] sm:$0xf]
        %v763 = vld [vmem:[#allocation8 + $0x28] sm:$0xf]
        %v764 = vld [vmem:[#allocation8 + $0x2c] sm:$0xf]
        %v765 = vld [vmem:[#allocation8 + $0x30] sm:$0xf]
        %v766 = vld [vmem:[#allocation8 + $0x34] sm:$0xf]
        %v767 = vld [vmem:[#allocation8 + $0x38] sm:$0xf]
        %v768 = vld [vmem:[#allocation8 + $0x3c] sm:$0xf]
        %v769 = vld [vmem:[%s3] sm:$0x1]
        %v771 = vlaneseq
        %v772 = vshrl.u32 %v771, 7
        %v773 = vsub.s32 0, %v772
        %v774 = vrot.slane %v769, %v773
        %v792 = vunpack.c.l.b16 %v753
        %v793 = vunpack.c.l.b16 %v754
        %v794 = vunpack.c.l.b16 %v755
        %v795 = vunpack.c.l.b16 %v756
        %v796 = vunpack.c.l.b16 %v757
        %v797 = vunpack.c.l.b16 %v758
        %v798 = vunpack.c.l.b16 %v759
        %v799 = vunpack.c.l.b16 %v760
        %v800 = vunpack.c.l.b16 %v761
        %v801 = vunpack.c.l.b16 %v762
        %v802 = vunpack.c.l.b16 %v763
        %v803 = vunpack.c.l.b16 %v764
        %v804 = vunpack.c.l.b16 %v765
        %v805 = vunpack.c.l.b16 %v766
        %v806 = vunpack.c.l.b16 %v767
        %v807 = vunpack.c.l.b16 %v768
        %v808 = vpack.c.b16 %v793, %v792
        %v809 = vpack.c.b16 %v795, %v794
        %v810 = vpack.c.b16 %v797, %v796
        %v811 = vpack.c.b16 %v799, %v798
        %v812 = vpack.c.b16 %v801, %v800
        %v813 = vpack.c.b16 %v803, %v802
        %v814 = vpack.c.b16 %v805, %v804
        %v815 = vpack.c.b16 %v807, %v806
        %824 = vmatprep.subr.bf16.mxu0 0
        %825 = vmatpush1.bf16.msra.mxu0 %v808
        %826 = vmatprep.subr.bf16.mxu0 0
        %827 = vmatpush1.bf16.msra.mxu0 %v809
        %828 = vmatprep.subr.bf16.mxu0 0
        %829 = vmatpush1.bf16.msra.mxu0 %v810
        %830 = vmatprep.subr.bf16.mxu0 0
        %831 = vmatpush1.bf16.msra.mxu0 %v811
        %832 = vmatprep.subr.bf16.mxu0 0
        %833 = vmatpush1.bf16.msra.mxu0 %v812
        %834 = vmatprep.subr.bf16.mxu0 0
        %835 = vmatpush1.bf16.msra.mxu0 %v813
        %836 = vmatprep.subr.bf16.mxu0 0
        %837 = vmatpush1.bf16.msra.mxu0 %v814
        %838 = vmatprep.subr.bf16.mxu0 0
        %839 = vmatpush1.bf16.msra.mxu0 %v815
        %840 = vmatprep.subr.bf16.mxu0 0
        %841 = vmatpush1.bf16.msra.mxu0 0
        %842 = vmatprep.subr.bf16.mxu0 0
        %843 = vmatpush1.bf16.msra.mxu0 0
        %844 = vmatprep.subr.bf16.mxu0 0
        %845 = vmatpush1.bf16.msra.mxu0 0
        %846 = vmatprep.subr.bf16.mxu0 0
        %847 = vmatpush1.bf16.msra.mxu0 0
        %848 = vmatprep.subr.bf16.mxu0 0
        %849 = vmatpush1.bf16.msra.mxu0 0
        %850 = vmatprep.subr.bf16.mxu0 0
        %851 = vmatpush1.bf16.msra.mxu0 0
        %852 = vmatprep.subr.bf16.mxu0 0
        %853 = vmatpush1.bf16.msra.mxu0 0
        %854 = vmatprep.subr.bf16.mxu0 0
        %855 = vmatpush1.bf16.msra.mxu0 0
        %856 = vmatprep.mubr.bf16.mxu0 0
        %857 = vmatmul.mubr.bf16.gmra.mrb[0].mxu0 %v745
        %v858 = vpop.f32.mrb[0].mxu0
        %v859 = vadd.f32 %v774, %v858
        %v860 = vpop.f32.mrb[0].mxu0
        %v861 = vpop.f32.mrb[0].mxu0
        %v862 = vadd.f32 %v774, %v861
        %v863 = vpop.f32.mrb[0].mxu0
        %864 = vmatprep.mubr.bf16.mxu0 0
        %865 = vmatmul.mubr.bf16.gmra.mrb[0].mxu0 %v746
        %v866 = vpop.f32.mrb[0].mxu0
        %v867 = vadd.f32 %v774, %v866
        %v868 = vpop.f32.mrb[0].mxu0
        %v869 = vpop.f32.mrb[0].mxu0
        %v870 = vadd.f32 %v774, %v869
        %v871 = vpop.f32.mrb[0].mxu0
        %872 = vmatprep.mubr.bf16.mxu0 0
        %873 = vmatmul.mubr.bf16.gmra.mrb[0].mxu0 %v747
        %v874 = vpop.f32.mrb[0].mxu0
        %v875 = vadd.f32 %v774, %v874
        %v876 = vpop.f32.mrb[0].mxu0
        %v877 = vpop.f32.mrb[0].mxu0
        %v878 = vadd.f32 %v774, %v877
        %v879 = vpop.f32.mrb[0].mxu0
        %880 = vmatprep.mubr.bf16.mxu0 0
        %881 = vmatmul.mubr.bf16.gmra.mrb[0].mxu0 %v748
        %v882 = vpop.f32.mrb[0].mxu0
        %v883 = vadd.f32 %v774, %v882
        %v884 = vpop.f32.mrb[0].mxu0
        %v885 = vpop.f32.mrb[0].mxu0
        %v886 = vadd.f32 %v774, %v885
        %v887 = vpop.f32.mrb[0].mxu0
        %888 = vmatprep.mubr.bf16.mxu0 0
        %889 = vmatmul.mubr.bf16.gmra.mrb[0].mxu0 %v749
        %v890 = vpop.f32.mrb[0].mxu0
        %v891 = vadd.f32 %v774, %v890
        %v892 = vpop.f32.mrb[0].mxu0
        %v893 = vpop.f32.mrb[0].mxu0
        %v894 = vadd.f32 %v774, %v893
        %v895 = vpop.f32.mrb[0].mxu0
        %896 = vmatprep.mubr.bf16.mxu0 0
        %897 = vmatmul.mubr.bf16.gmra.mrb[0].mxu0 %v750
        %v898 = vpop.f32.mrb[0].mxu0
        %v899 = vadd.f32 %v774, %v898
        %v900 = vpop.f32.mrb[0].mxu0
        %v901 = vpop.f32.mrb[0].mxu0
        %v902 = vadd.f32 %v774, %v901
        %v903 = vpop.f32.mrb[0].mxu0
        %904 = vmatprep.mubr.bf16.mxu0 0
        %905 = vmatmul.mubr.bf16.gmra.mrb[0].mxu0 %v751
        %v906 = vpop.f32.mrb[0].mxu0
        %v907 = vadd.f32 %v774, %v906
        %v908 = vpop.f32.mrb[0].mxu0
        %v909 = vpop.f32.mrb[0].mxu0
        %v910 = vadd.f32 %v774, %v909
        %v911 = vpop.f32.mrb[0].mxu0
        %912 = vmatprep.mubr.bf16.mxu0 0
        %913 = vmatmul.mubr.bf16.gmra.mrb[0].mxu0 %v752
        %v914 = vpop.f32.mrb[0].mxu0
        %v915 = vadd.f32 %v774, %v914
        %v916 = vpop.f32.mrb[0].mxu0
        %v917 = vpop.f32.mrb[0].mxu0
        %v918 = vadd.f32 %v774, %v917
        %v919 = vpop.f32.mrb[0].mxu0
        %920 = vdwg.mxu0
        %v921 = vmax.f32 %v859, 0.0
        %v922 = vmax.f32 %v862, 0.0
        %v923 = vmax.f32 %v867, 0.0
        %v924 = vmax.f32 %v870, 0.0
        %v925 = vmax.f32 %v875, 0.0
        %v926 = vmax.f32 %v878, 0.0
        %v927 = vmax.f32 %v883, 0.0
        %v928 = vmax.f32 %v886, 0.0
        %v929 = vmax.f32 %v891, 0.0
        %v930 = vmax.f32 %v894, 0.0
        %v931 = vmax.f32 %v899, 0.0
        %v932 = vmax.f32 %v902, 0.0
        %v933 = vmax.f32 %v907, 0.0
        %v934 = vmax.f32 %v910, 0.0
        %v935 = vmax.f32 %v915, 0.0
        %v936 = vmax.f32 %v918, 0.0
        %v937 = vpack.c.bf16 %v922, %v921
        %v938 = vpack.c.bf16 %v924, %v923
        %v939 = vpack.c.bf16 %v926, %v925
        %v940 = vpack.c.bf16 %v928, %v927
        %v941 = vpack.c.bf16 %v930, %v929
        %v942 = vpack.c.bf16 %v932, %v931
        %v943 = vpack.c.bf16 %v934, %v933
        %v944 = vpack.c.bf16 %v936, %v935
        %v945 = vld [vmem:[#allocation9] sm:$0xff]
        %v946 = vld [vmem:[#allocation9 + $0x8] sm:$0xff]
        %v947 = vld [vmem:[#allocation9 + $0x10] sm:$0xff]
        %v948 = vld [vmem:[#allocation9 + $0x18] sm:$0xff]
        %v949 = vld [vmem:[#allocation9 + $0x20] sm:$0xff]
        %v950 = vld [vmem:[#allocation9 + $0x28] sm:$0xff]
        %v951 = vld [vmem:[#allocation9 + $0x30] sm:$0xff]
        %v952 = vld [vmem:[#allocation9 + $0x38] sm:$0xff]
        %v953 = vld [vmem:[#allocation9 + $0x40] sm:$0xff]
        %v954 = vld [vmem:[#allocation9 + $0x48] sm:$0xff]
        %v955 = vld [vmem:[#allocation9 + $0x50] sm:$0xff]
        %v956 = vld [vmem:[#allocation9 + $0x58] sm:$0xff]
        %v957 = vld [vmem:[#allocation9 + $0x60] sm:$0xff]
        %v958 = vld [vmem:[#allocation9 + $0x68] sm:$0xff]
        %v959 = vld [vmem:[#allocation9 + $0x70] sm:$0xff]
        %v960 = vld [vmem:[#allocation9 + $0x78] sm:$0xff]
        %v961 = vld [vmem:[%s5] sm:$0x3]
        %v963 = vlaneseq
        %v964 = vshrl.u32 %v963, 7
        %v965 = vsub.s32 0, %v964
        %v966 = vrot.slane %v961, %v965
        %v967 = vlaneseq
        %v968 = vshrl.u32 %v967, 7
        %v969 = vsub.s32 1, %v968
        %v970 = vrot.slane %v961, %v969
        %v989 = vunpack.c.l.b16 %v945
        %v990 = vunpack.c.h.b16 %v945
        %v991 = vunpack.c.l.b16 %v946
        %v992 = vunpack.c.h.b16 %v946
        %v993 = vunpack.c.l.b16 %v947
        %v994 = vunpack.c.h.b16 %v947
        %v995 = vunpack.c.l.b16 %v948
        %v996 = vunpack.c.h.b16 %v948
        %v997 = vunpack.c.l.b16 %v949
        %v998 = vunpack.c.h.b16 %v949
        %v999 = vunpack.c.l.b16 %v950
        %v1000 = vunpack.c.h.b16 %v950
        %v1001 = vunpack.c.l.b16 %v951
        %v1002 = vunpack.c.h.b16 %v951
        %v1003 = vunpack.c.l.b16 %v952
        %v1004 = vunpack.c.h.b16 %v952
        %v1005 = vunpack.c.l.b16 %v953
        %v1006 = vunpack.c.h.b16 %v953
        %v1007 = vunpack.c.l.b16 %v954
        %v1008 = vunpack.c.h.b16 %v954
        %v1009 = vunpack.c.l.b16 %v955
        %v1010 = vunpack.c.h.b16 %v955
        %v1011 = vunpack.c.l.b16 %v956
        %v1012 = vunpack.c.h.b16 %v956
        %v1013 = vunpack.c.l.b16 %v957
        %v1014 = vunpack.c.h.b16 %v957
        %v1015 = vunpack.c.l.b16 %v958
        %v1016 = vunpack.c.h.b16 %v958
        %v1017 = vunpack.c.l.b16 %v959
        %v1018 = vunpack.c.h.b16 %v959
        %v1019 = vunpack.c.l.b16 %v960
        %v1020 = vunpack.c.h.b16 %v960
        %v1021 = vpack.c.b16 %v991, %v989
        %v1022 = vpack.c.b16 %v992, %v990
        %v1023 = vpack.c.b16 %v995, %v993
        %v1024 = vpack.c.b16 %v996, %v994
        %v1025 = vpack.c.b16 %v999, %v997
        %v1026 = vpack.c.b16 %v1000, %v998
        %v1027 = vpack.c.b16 %v1003, %v1001
        %v1028 = vpack.c.b16 %v1004, %v1002
        %v1029 = vpack.c.b16 %v1007, %v1005
        %v1030 = vpack.c.b16 %v1008, %v1006
        %v1031 = vpack.c.b16 %v1011, %v1009
        %v1032 = vpack.c.b16 %v1012, %v1010
        %v1033 = vpack.c.b16 %v1015, %v1013
        %v1034 = vpack.c.b16 %v1016, %v1014
        %v1035 = vpack.c.b16 %v1019, %v1017
        %v1036 = vpack.c.b16 %v1020, %v1018
        %1053 = vmatprep.subr.bf16.mxu0 %v1022
        %1054 = vmatpush1.bf16.msra.mxu0 %v1021
        %1055 = vmatprep.subr.bf16.mxu0 %v1024
        %1056 = vmatpush1.bf16.msra.mxu0 %v1023
        %1057 = vmatprep.subr.bf16.mxu0 %v1026
        %1058 = vmatpush1.bf16.msra.mxu0 %v1025
        %1059 = vmatprep.subr.bf16.mxu0 %v1028
        %1060 = vmatpush1.bf16.msra.mxu0 %v1027
        %1061 = vmatprep.subr.bf16.mxu0 %v1030
        %1062 = vmatpush1.bf16.msra.mxu0 %v1029
        %1063 = vmatprep.subr.bf16.mxu0 %v1032
        %1064 = vmatpush1.bf16.msra.mxu0 %v1031
        %1065 = vmatprep.subr.bf16.mxu0 %v1034
        %1066 = vmatpush1.bf16.msra.mxu0 %v1033
        %1067 = vmatprep.subr.bf16.mxu0 %v1036
        %1068 = vmatpush1.bf16.msra.mxu0 %v1035
        %1069 = vmatprep.subr.bf16.mxu0 0
        %1070 = vmatpush1.bf16.msra.mxu0 0
        %1071 = vmatprep.subr.bf16.mxu0 0
        %1072 = vmatpush1.bf16.msra.mxu0 0
        %1073 = vmatprep.subr.bf16.mxu0 0
        %1074 = vmatpush1.bf16.msra.mxu0 0
        %1075 = vmatprep.subr.bf16.mxu0 0
        %1076 = vmatpush1.bf16.msra.mxu0 0
        %1077 = vmatprep.subr.bf16.mxu0 0
        %1078 = vmatpush1.bf16.msra.mxu0 0
        %1079 = vmatprep.subr.bf16.mxu0 0
        %1080 = vmatpush1.bf16.msra.mxu0 0
        %1081 = vmatprep.subr.bf16.mxu0 0
        %1082 = vmatpush1.bf16.msra.mxu0 0
        %1083 = vmatprep.subr.bf16.mxu0 0
        %1084 = vmatpush1.bf16.msra.mxu0 0
        %1085 = vmatprep.mubr.bf16.mxu0 0
        %1086 = vmatmul.mubr.bf16.gmra.mrb[0].mxu0 %v937
        %v1087 = vpop.f32.mrb[0].mxu0
        %v1088 = vadd.f32 %v966, %v1087
        %v1089 = vpop.f32.mrb[0].mxu0
        %v1090 = vadd.f32 %v970, %v1089
        %v1091 = vpop.f32.mrb[0].mxu0
        %v1092 = vadd.f32 %v966, %v1091
        %v1093 = vpop.f32.mrb[0].mxu0
        %v1094 = vadd.f32 %v970, %v1093
        %1095 = vmatprep.mubr.bf16.mxu0 0
        %1096 = vmatmul.mubr.bf16.gmra.mrb[0].mxu0 %v938
        %v1097 = vpop.f32.mrb[0].mxu0
        %v1098 = vadd.f32 %v966, %v1097
        %v1099 = vpop.f32.mrb[0].mxu0
        %v1100 = vadd.f32 %v970, %v1099
        %v1101 = vpop.f32.mrb[0].mxu0
        %v1102 = vadd.f32 %v966, %v1101
        %v1103 = vpop.f32.mrb[0].mxu0
        %v1104 = vadd.f32 %v970, %v1103
        %1105 = vmatprep.mubr.bf16.mxu0 0
        %1106 = vmatmul.mubr.bf16.gmra.mrb[0].mxu0 %v939
        %v1107 = vpop.f32.mrb[0].mxu0
        %v1108 = vadd.f32 %v966, %v1107
        %v1109 = vpop.f32.mrb[0].mxu0
        %v1110 = vadd.f32 %v970, %v1109
        %v1111 = vpop.f32.mrb[0].mxu0
        %v1112 = vadd.f32 %v966, %v1111
        %v1113 = vpop.f32.mrb[0].mxu0
        %v1114 = vadd.f32 %v970, %v1113
        %1115 = vmatprep.mubr.bf16.mxu0 0
        %1116 = vmatmul.mubr.bf16.gmra.mrb[0].mxu0 %v940
        %v1117 = vpop.f32.mrb[0].mxu0
        %v1118 = vadd.f32 %v966, %v1117
        %v1119 = vpop.f32.mrb[0].mxu0
        %v1120 = vadd.f32 %v970, %v1119
        %v1121 = vpop.f32.mrb[0].mxu0
        %v1122 = vadd.f32 %v966, %v1121
        %v1123 = vpop.f32.mrb[0].mxu0
        %v1124 = vadd.f32 %v970, %v1123
        %1125 = vmatprep.mubr.bf16.mxu0 0
        %1126 = vmatmul.mubr.bf16.gmra.mrb[0].mxu0 %v941
        %v1127 = vpop.f32.mrb[0].mxu0
        %v1128 = vadd.f32 %v966, %v1127
        %v1129 = vpop.f32.mrb[0].mxu0
        %v1130 = vadd.f32 %v970, %v1129
        %v1131 = vpop.f32.mrb[0].mxu0
        %v1132 = vadd.f32 %v966, %v1131
        %v1133 = vpop.f32.mrb[0].mxu0
        %v1134 = vadd.f32 %v970, %v1133
        %1135 = vmatprep.mubr.bf16.mxu0 0
        %1136 = vmatmul.mubr.bf16.gmra.mrb[0].mxu0 %v942
        %v1137 = vpop.f32.mrb[0].mxu0
        %v1138 = vadd.f32 %v966, %v1137
        %v1139 = vpop.f32.mrb[0].mxu0
        %v1140 = vadd.f32 %v970, %v1139
        %v1141 = vpop.f32.mrb[0].mxu0
        %v1142 = vadd.f32 %v966, %v1141
        %v1143 = vpop.f32.mrb[0].mxu0
        %v1144 = vadd.f32 %v970, %v1143
        %1145 = vmatprep.mubr.bf16.mxu0 0
        %1146 = vmatmul.mubr.bf16.gmra.mrb[0].mxu0 %v943
        %v1147 = vpop.f32.mrb[0].mxu0
        %v1148 = vadd.f32 %v966, %v1147
        %v1149 = vpop.f32.mrb[0].mxu0
        %v1150 = vadd.f32 %v970, %v1149
        %v1151 = vpop.f32.mrb[0].mxu0
        %v1152 = vadd.f32 %v966, %v1151
        %v1153 = vpop.f32.mrb[0].mxu0
        %v1154 = vadd.f32 %v970, %v1153
        %1155 = vmatprep.mubr.bf16.mxu0 0
        %1156 = vmatmul.mubr.bf16.gmra.mrb[0].mxu0 %v944
        %v1157 = vpop.f32.mrb[0].mxu0
        %v1158 = vadd.f32 %v966, %v1157
        %v1159 = vpop.f32.mrb[0].mxu0
        %v1160 = vadd.f32 %v970, %v1159
        %v1161 = vpop.f32.mrb[0].mxu0
        %v1162 = vadd.f32 %v966, %v1161
        %v1163 = vpop.f32.mrb[0].mxu0
        %v1164 = vadd.f32 %v970, %v1163
        %1165 = vdwg.mxu0
        %v1166 = vmul.f32 %v1088, 1.442695
        %v1167 = vpow.pop %v1166
        %v1168 = vmul.f32 %v1092, 1.442695
        %v1169 = vpow.pop %v1168
        %v1170 = vmul.f32 %v1098, 1.442695
        %v1171 = vpow.pop %v1170
        %v1172 = vmul.f32 %v1102, 1.442695
        %v1173 = vpow.pop %v1172
        %v1174 = vmul.f32 %v1108, 1.442695
        %v1175 = vpow.pop %v1174
        %v1176 = vmul.f32 %v1112, 1.442695
        %v1177 = vpow.pop %v1176
        %v1178 = vmul.f32 %v1118, 1.442695
        %v1179 = vpow.pop %v1178
        %v1180 = vmul.f32 %v1122, 1.442695
        %v1181 = vpow.pop %v1180
        %v1182 = vmul.f32 %v1128, 1.442695
        %v1183 = vpow.pop %v1182
        %v1184 = vmul.f32 %v1132, 1.442695
        %v1185 = vpow.pop %v1184
        %v1186 = vmul.f32 %v1138, 1.442695
        %v1187 = vpow.pop %v1186
        %v1188 = vmul.f32 %v1142, 1.442695
        %v1189 = vpow.pop %v1188
        %v1190 = vmul.f32 %v1148, 1.442695
        %v1191 = vpow.pop %v1190
        %v1192 = vmul.f32 %v1152, 1.442695
        %v1193 = vpow.pop %v1192
        %v1194 = vmul.f32 %v1158, 1.442695
        %v1195 = vpow.pop %v1194
        %v1196 = vmul.f32 %v1162, 1.442695
        %v1197 = vpow.pop %v1196
        %v1198 = vmul.f32 %v1167, %v713
        %v1199 = vmul.f32 %v1169, %v714
        %v1200 = vmul.f32 %v1171, %v715
        %v1201 = vmul.f32 %v1173, %v716
        %v1202 = vmul.f32 %v1175, %v717
        %v1203 = vmul.f32 %v1177, %v718
        %v1204 = vmul.f32 %v1179, %v719
        %v1205 = vmul.f32 %v1181, %v720
        %v1206 = vmul.f32 %v1183, %v721
        %v1207 = vmul.f32 %v1185, %v722
        %v1208 = vmul.f32 %v1187, %v723
        %v1209 = vmul.f32 %v1189, %v724
        %v1210 = vmul.f32 %v1191, %v725
        %v1211 = vmul.f32 %v1193, %v726
        %v1212 = vmul.f32 %v1195, %v727
        %v1213 = vmul.f32 %v1197, %v728
        %v1214 = vadd.f32 %v1198, %v1090
        %v1215 = vadd.f32 %v1199, %v1094
        %v1216 = vadd.f32 %v1200, %v1100
        %v1217 = vadd.f32 %v1201, %v1104
        %v1218 = vadd.f32 %v1202, %v1110
        %v1219 = vadd.f32 %v1203, %v1114
        %v1220 = vadd.f32 %v1204, %v1120
        %v1221 = vadd.f32 %v1205, %v1124
        %v1222 = vadd.f32 %v1206, %v1130
        %v1223 = vadd.f32 %v1207, %v1134
        %v1224 = vadd.f32 %v1208, %v1140
        %v1225 = vadd.f32 %v1209, %v1144
        %v1226 = vadd.f32 %v1210, %v1150
        %v1227 = vadd.f32 %v1211, %v1154
        %v1228 = vadd.f32 %v1212, %v1160
        %v1229 = vadd.f32 %v1213, %v1164
        %1230 = vadd.xlane.f32.xlu0 %v1088
        %v1231 = vpop.xlane.xlu0 %1230
        %1232 = vadd.xlane.f32.xlu0 %v1092
        %v1233 = vpop.xlane.xlu0 %1232
        %1234 = vadd.xlane.f32.xlu0 %v1098
        %v1235 = vpop.xlane.xlu0 %1234
        %1236 = vadd.xlane.f32.xlu0 %v1102
        %v1237 = vpop.xlane.xlu0 %1236
        %1238 = vadd.xlane.f32.xlu0 %v1108
        %v1239 = vpop.xlane.xlu0 %1238
        %1240 = vadd.xlane.f32.xlu0 %v1112
        %v1241 = vpop.xlane.xlu0 %1240
        %1242 = vadd.xlane.f32.xlu0 %v1118
        %v1243 = vpop.xlane.xlu0 %1242
        %1244 = vadd.xlane.f32.xlu0 %v1122
        %v1245 = vpop.xlane.xlu0 %1244
        %1246 = vadd.xlane.f32.xlu0 %v1128
        %v1247 = vpop.xlane.xlu0 %1246
        %1248 = vadd.xlane.f32.xlu0 %v1132
        %v1249 = vpop.xlane.xlu0 %1248
        %1250 = vadd.xlane.f32.xlu0 %v1138
        %v1251 = vpop.xlane.xlu0 %1250
        %1252 = vadd.xlane.f32.xlu0 %v1142
        %v1253 = vpop.xlane.xlu0 %1252
        %1254 = vadd.xlane.f32.xlu0 %v1148
        %v1255 = vpop.xlane.xlu0 %1254
        %1256 = vadd.xlane.f32.xlu0 %v1152
        %v1257 = vpop.xlane.xlu0 %1256
        %1258 = vadd.xlane.f32.xlu0 %v1158
        %v1259 = vpop.xlane.xlu0 %1258
        %1260 = vadd.xlane.f32.xlu0 %v1162
        %v1261 = vpop.xlane.xlu0 %1260
        %v1262 = vpack.c.bf16 %v1215, %v1214
        %v1263 = vpack.c.bf16 %v1217, %v1216
        %v1264 = vpack.c.bf16 %v1219, %v1218
        %v1265 = vpack.c.bf16 %v1221, %v1220
        %v1266 = vpack.c.bf16 %v1223, %v1222
        %v1267 = vpack.c.bf16 %v1225, %v1224
        %v1268 = vpack.c.bf16 %v1227, %v1226
        %v1269 = vpack.c.bf16 %v1229, %v1228
        %v1270 = vld [vmem:[#allocation11] sm:$0xf]
        %v1271 = vld [vmem:[#allocation11 + $0x4] sm:$0xf]
        %v1272 = vld [vmem:[#allocation11 + $0x8] sm:$0xf]
        %v1273 = vld [vmem:[#allocation11 + $0xc] sm:$0xf]
        %v1274 = vld [vmem:[#allocation11 + $0x10] sm:$0xf]
        %v1275 = vld [vmem:[#allocation11 + $0x14] sm:$0xf]
        %v1276 = vld [vmem:[#allocation11 + $0x18] sm:$0xf]
        %v1277 = vld [vmem:[#allocation11 + $0x1c] sm:$0xf]
        %v1278 = vld [vmem:[#allocation11 + $0x20] sm:$0xf]
        %v1279 = vld [vmem:[#allocation11 + $0x24] sm:$0xf]
        %v1280 = vld [vmem:[#allocation11 + $0x28] sm:$0xf]
        %v1281 = vld [vmem:[#allocation11 + $0x2c] sm:$0xf]
        %v1282 = vld [vmem:[#allocation11 + $0x30] sm:$0xf]
        %v1283 = vld [vmem:[#allocation11 + $0x34] sm:$0xf]
        %v1284 = vld [vmem:[#allocation11 + $0x38] sm:$0xf]
        %v1285 = vld [vmem:[#allocation11 + $0x3c] sm:$0xf]
        %v1286 = vld [vmem:[%s7] sm:$0x1]
        %v1288 = vlaneseq
        %v1289 = vshrl.u32 %v1288, 7
        %v1290 = vsub.s32 0, %v1289
        %v1291 = vrot.slane %v1286, %v1290
        %v1309 = vunpack.c.l.b16 %v1270
        %v1310 = vunpack.c.l.b16 %v1271
        %v1311 = vunpack.c.l.b16 %v1272
        %v1312 = vunpack.c.l.b16 %v1273
        %v1313 = vunpack.c.l.b16 %v1274
        %v1314 = vunpack.c.l.b16 %v1275
        %v1315 = vunpack.c.l.b16 %v1276
        %v1316 = vunpack.c.l.b16 %v1277
        %v1317 = vunpack.c.l.b16 %v1278
        %v1318 = vunpack.c.l.b16 %v1279
        %v1319 = vunpack.c.l.b16 %v1280
        %v1320 = vunpack.c.l.b16 %v1281
        %v1321 = vunpack.c.l.b16 %v1282
        %v1322 = vunpack.c.l.b16 %v1283
        %v1323 = vunpack.c.l.b16 %v1284
        %v1324 = vunpack.c.l.b16 %v1285
        %v1325 = vpack.c.b16 %v1310, %v1309
        %v1326 = vpack.c.b16 %v1312, %v1311
        %v1327 = vpack.c.b16 %v1314, %v1313
        %v1328 = vpack.c.b16 %v1316, %v1315
        %v1329 = vpack.c.b16 %v1318, %v1317
        %v1330 = vpack.c.b16 %v1320, %v1319
        %v1331 = vpack.c.b16 %v1322, %v1321
        %v1332 = vpack.c.b16 %v1324, %v1323
        %1341 = vmatprep.subr.bf16.mxu0 0
        %1342 = vmatpush1.bf16.msra.mxu0 %v1325
        %1343 = vmatprep.subr.bf16.mxu0 0
        %1344 = vmatpush1.bf16.msra.mxu0 %v1326
        %1345 = vmatprep.subr.bf16.mxu0 0
        %1346 = vmatpush1.bf16.msra.mxu0 %v1327
        %1347 = vmatprep.subr.bf16.mxu0 0
        %1348 = vmatpush1.bf16.msra.mxu0 %v1328
        %1349 = vmatprep.subr.bf16.mxu0 0
        %1350 = vmatpush1.bf16.msra.mxu0 %v1329
        %1351 = vmatprep.subr.bf16.mxu0 0
        %1352 = vmatpush1.bf16.msra.mxu0 %v1330
        %1353 = vmatprep.subr.bf16.mxu0 0
        %1354 = vmatpush1.bf16.msra.mxu0 %v1331
        %1355 = vmatprep.subr.bf16.mxu0 0
        %1356 = vmatpush1.bf16.msra.mxu0 %v1332
        %1357 = vmatprep.subr.bf16.mxu0 0
        %1358 = vmatpush1.bf16.msra.mxu0 0
        %1359 = vmatprep.subr.bf16.mxu0 0
        %1360 = vmatpush1.bf16.msra.mxu0 0
        %1361 = vmatprep.subr.bf16.mxu0 0
        %1362 = vmatpush1.bf16.msra.mxu0 0
        %1363 = vmatprep.subr.bf16.mxu0 0
        %1364 = vmatpush1.bf16.msra.mxu0 0
        %1365 = vmatprep.subr.bf16.mxu0 0
        %1366 = vmatpush1.bf16.msra.mxu0 0
        %1367 = vmatprep.subr.bf16.mxu0 0
        %1368 = vmatpush1.bf16.msra.mxu0 0
        %1369 = vmatprep.subr.bf16.mxu0 0
        %1370 = vmatpush1.bf16.msra.mxu0 0
        %1371 = vmatprep.subr.bf16.mxu0 0
        %1372 = vmatpush1.bf16.msra.mxu0 0
        %1373 = vmatprep.mubr.bf16.mxu0 0
        %1374 = vmatmul.mubr.bf16.gmra.mrb[0].mxu0 %v1262
        %v1375 = vpop.f32.mrb[0].mxu0
        %v1376 = vadd.f32 %v1291, %v1375
        %v1377 = vpop.f32.mrb[0].mxu0
        %v1378 = vpop.f32.mrb[0].mxu0
        %v1379 = vadd.f32 %v1291, %v1378
        %v1380 = vpop.f32.mrb[0].mxu0
        %1381 = vmatprep.mubr.bf16.mxu0 0
        %1382 = vmatmul.mubr.bf16.gmra.mrb[0].mxu0 %v1263
        %v1383 = vpop.f32.mrb[0].mxu0
        %v1384 = vadd.f32 %v1291, %v1383
        %v1385 = vpop.f32.mrb[0].mxu0
        %v1386 = vpop.f32.mrb[0].mxu0
        %v1387 = vadd.f32 %v1291, %v1386
        %v1388 = vpop.f32.mrb[0].mxu0
        %1389 = vmatprep.mubr.bf16.mxu0 0
        %1390 = vmatmul.mubr.bf16.gmra.mrb[0].mxu0 %v1264
        %v1391 = vpop.f32.mrb[0].mxu0
        %v1392 = vadd.f32 %v1291, %v1391
        %v1393 = vpop.f32.mrb[0].mxu0
        %v1394 = vpop.f32.mrb[0].mxu0
        %v1395 = vadd.f32 %v1291, %v1394
        %v1396 = vpop.f32.mrb[0].mxu0
        %1397 = vmatprep.mubr.bf16.mxu0 0
        %1398 = vmatmul.mubr.bf16.gmra.mrb[0].mxu0 %v1265
        %v1399 = vpop.f32.mrb[0].mxu0
        %v1400 = vadd.f32 %v1291, %v1399
        %v1401 = vpop.f32.mrb[0].mxu0
        %v1402 = vpop.f32.mrb[0].mxu0
        %v1403 = vadd.f32 %v1291, %v1402
        %v1404 = vpop.f32.mrb[0].mxu0
        %1405 = vmatprep.mubr.bf16.mxu0 0
        %1406 = vmatmul.mubr.bf16.gmra.mrb[0].mxu0 %v1266
        %v1407 = vpop.f32.mrb[0].mxu0
        %v1408 = vadd.f32 %v1291, %v1407
        %v1409 = vpop.f32.mrb[0].mxu0
        %v1410 = vpop.f32.mrb[0].mxu0
        %v1411 = vadd.f32 %v1291, %v1410
        %v1412 = vpop.f32.mrb[0].mxu0
        %1413 = vmatprep.mubr.bf16.mxu0 0
        %1414 = vmatmul.mubr.bf16.gmra.mrb[0].mxu0 %v1267
        %v1415 = vpop.f32.mrb[0].mxu0
        %v1416 = vadd.f32 %v1291, %v1415
        %v1417 = vpop.f32.mrb[0].mxu0
        %v1418 = vpop.f32.mrb[0].mxu0
        %v1419 = vadd.f32 %v1291, %v1418
        %v1420 = vpop.f32.mrb[0].mxu0
        %1421 = vmatprep.mubr.bf16.mxu0 0
        %1422 = vmatmul.mubr.bf16.gmra.mrb[0].mxu0 %v1268
        %v1423 = vpop.f32.mrb[0].mxu0
        %v1424 = vadd.f32 %v1291, %v1423
        %v1425 = vpop.f32.mrb[0].mxu0
        %v1426 = vpop.f32.mrb[0].mxu0
        %v1427 = vadd.f32 %v1291, %v1426
        %v1428 = vpop.f32.mrb[0].mxu0
        %1429 = vmatprep.mubr.bf16.mxu0 0
        %1430 = vmatmul.mubr.bf16.gmra.mrb[0].mxu0 %v1269
        %v1431 = vpop.f32.mrb[0].mxu0
        %v1432 = vadd.f32 %v1291, %v1431
        %v1433 = vpop.f32.mrb[0].mxu0
        %v1434 = vpop.f32.mrb[0].mxu0
        %v1435 = vadd.f32 %v1291, %v1434
        %v1436 = vpop.f32.mrb[0].mxu0
        %1437 = vdwg.mxu0
        %v1438 = vld [vmem:[%s9] sm:$0x1]
        %v1440 = vlaneseq
        %v1441 = vshrl.u32 %v1440, 7
        %v1442 = vsub.s32 0, %v1441
        %v1443 = vrot.slane %v1438, %v1442
        %v1445 = vmul.f32 %v1376, %v1443
        %v1446 = vmul.f32 %v1379, %v1443
        %v1447 = vmul.f32 %v1384, %v1443
        %v1448 = vmul.f32 %v1387, %v1443
        %v1449 = vmul.f32 %v1392, %v1443
        %v1450 = vmul.f32 %v1395, %v1443
        %v1451 = vmul.f32 %v1400, %v1443
        %v1452 = vmul.f32 %v1403, %v1443
        %v1453 = vmul.f32 %v1408, %v1443
        %v1454 = vmul.f32 %v1411, %v1443
        %v1455 = vmul.f32 %v1416, %v1443
        %v1456 = vmul.f32 %v1419, %v1443
        %v1457 = vmul.f32 %v1424, %v1443
        %v1458 = vmul.f32 %v1427, %v1443
        %v1459 = vmul.f32 %v1432, %v1443
        %v1460 = vmul.f32 %v1435, %v1443
        %v1461 = vpack.c.bf16 %v1446, %v1445
        %v1462 = vpack.c.bf16 %v1448, %v1447
        %v1463 = vpack.c.bf16 %v1450, %v1449
        %v1464 = vpack.c.bf16 %v1452, %v1451
        %v1465 = vpack.c.bf16 %v1454, %v1453
        %v1466 = vpack.c.bf16 %v1456, %v1455
        %v1467 = vpack.c.bf16 %v1458, %v1457
        %v1468 = vpack.c.bf16 %v1460, %v1459
        %v1469 = vld [vmem:[#allocation12] sm:$0xf]
        %v1470 = vld [vmem:[#allocation12 + $0x4] sm:$0xf]
        %v1471 = vld [vmem:[#allocation12 + $0x8] sm:$0xf]
        %v1472 = vld [vmem:[#allocation12 + $0xc] sm:$0xf]
        %v1473 = vld [vmem:[#allocation12 + $0x10] sm:$0xf]
        %v1474 = vld [vmem:[#allocation12 + $0x14] sm:$0xf]
        %v1475 = vld [vmem:[#allocation12 + $0x18] sm:$0xf]
        %v1476 = vld [vmem:[#allocation12 + $0x1c] sm:$0xf]
        %v1477 = vld [vmem:[#allocation12 + $0x20] sm:$0xf]
        %v1478 = vld [vmem:[#allocation12 + $0x24] sm:$0xf]
        %v1479 = vld [vmem:[#allocation12 + $0x28] sm:$0xf]
        %v1480 = vld [vmem:[#allocation12 + $0x2c] sm:$0xf]
        %v1481 = vld [vmem:[#allocation12 + $0x30] sm:$0xf]
        %v1482 = vld [vmem:[#allocation12 + $0x34] sm:$0xf]
        %v1483 = vld [vmem:[#allocation12 + $0x38] sm:$0xf]
        %v1484 = vld [vmem:[#allocation12 + $0x3c] sm:$0xf]
        %v1485 = vld [vmem:[#allocation12 + $0x40] sm:$0xf]
        %v1486 = vld [vmem:[#allocation12 + $0x44] sm:$0xf]
        %v1487 = vld [vmem:[#allocation12 + $0x48] sm:$0xf]
        %v1488 = vld [vmem:[#allocation12 + $0x4c] sm:$0xf]
        %v1489 = vld [vmem:[#allocation12 + $0x50] sm:$0xf]
        %v1490 = vld [vmem:[#allocation12 + $0x54] sm:$0xf]
        %v1491 = vld [vmem:[#allocation12 + $0x58] sm:$0xf]
        %v1492 = vld [vmem:[#allocation12 + $0x5c] sm:$0xf]
        %v1493 = vld [vmem:[#allocation12 + $0x60] sm:$0xf]
        %v1494 = vld [vmem:[#allocation12 + $0x64] sm:$0xf]
        %v1495 = vld [vmem:[#allocation12 + $0x68] sm:$0xf]
        %v1496 = vld [vmem:[#allocation12 + $0x6c] sm:$0xf]
        %v1497 = vld [vmem:[#allocation12 + $0x70] sm:$0xf]
        %v1498 = vld [vmem:[#allocation12 + $0x74] sm:$0xf]
        %v1499 = vld [vmem:[#allocation12 + $0x78] sm:$0xf]
        %v1500 = vld [vmem:[#allocation12 + $0x7c] sm:$0xf]
        %v1501 = vld [vmem:[%s11] sm:$0x1]
        %v1503 = vlaneseq
        %v1504 = vshrl.u32 %v1503, 7
        %v1505 = vsub.s32 0, %v1504
        %v1506 = vrot.slane %v1501, %v1505
        %v1540 = vunpack.c.l.b16 %v1469
        %v1541 = vunpack.c.l.b16 %v1470
        %v1542 = vunpack.c.l.b16 %v1471
        %v1543 = vunpack.c.l.b16 %v1472
        %v1544 = vunpack.c.l.b16 %v1473
        %v1545 = vunpack.c.l.b16 %v1474
        %v1546 = vunpack.c.l.b16 %v1475
        %v1547 = vunpack.c.l.b16 %v1476
        %v1548 = vunpack.c.l.b16 %v1477
        %v1549 = vunpack.c.l.b16 %v1478
        %v1550 = vunpack.c.l.b16 %v1479
        %v1551 = vunpack.c.l.b16 %v1480
        %v1552 = vunpack.c.l.b16 %v1481
        %v1553 = vunpack.c.l.b16 %v1482
        %v1554 = vunpack.c.l.b16 %v1483
        %v1555 = vunpack.c.l.b16 %v1484
        %v1556 = vunpack.c.l.b16 %v1485
        %v1557 = vunpack.c.l.b16 %v1486
        %v1558 = vunpack.c.l.b16 %v1487
        %v1559 = vunpack.c.l.b16 %v1488
        %v1560 = vunpack.c.l.b16 %v1489
        %v1561 = vunpack.c.l.b16 %v1490
        %v1562 = vunpack.c.l.b16 %v1491
        %v1563 = vunpack.c.l.b16 %v1492
        %v1564 = vunpack.c.l.b16 %v1493
        %v1565 = vunpack.c.l.b16 %v1494
        %v1566 = vunpack.c.l.b16 %v1495
        %v1567 = vunpack.c.l.b16 %v1496
        %v1568 = vunpack.c.l.b16 %v1497
        %v1569 = vunpack.c.l.b16 %v1498
        %v1570 = vunpack.c.l.b16 %v1499
        %v1571 = vunpack.c.l.b16 %v1500
        %v1572 = vpack.c.b16 %v1541, %v1540
        %v1573 = vpack.c.b16 %v1543, %v1542
        %v1574 = vpack.c.b16 %v1545, %v1544
        %v1575 = vpack.c.b16 %v1547, %v1546
        %v1576 = vpack.c.b16 %v1549, %v1548
        %v1577 = vpack.c.b16 %v1551, %v1550
        %v1578 = vpack.c.b16 %v1553, %v1552
        %v1579 = vpack.c.b16 %v1555, %v1554
        %v1580 = vpack.c.b16 %v1557, %v1556
        %v1581 = vpack.c.b16 %v1559, %v1558
        %v1582 = vpack.c.b16 %v1561, %v1560
        %v1583 = vpack.c.b16 %v1563, %v1562
        %v1584 = vpack.c.b16 %v1565, %v1564
        %v1585 = vpack.c.b16 %v1567, %v1566
        %v1586 = vpack.c.b16 %v1569, %v1568
        %v1587 = vpack.c.b16 %v1571, %v1570
        %1604 = vmatprep.subr.bf16.mxu0 0
        %1605 = vmatpush1.bf16.msra.mxu0 %v1572
        %1606 = vmatprep.subr.bf16.mxu0 0
        %1607 = vmatpush1.bf16.msra.mxu0 %v1573
        %1608 = vmatprep.subr.bf16.mxu0 0
        %1609 = vmatpush1.bf16.msra.mxu0 %v1574
        %1610 = vmatprep.subr.bf16.mxu0 0
        %1611 = vmatpush1.bf16.msra.mxu0 %v1575
        %1612 = vmatprep.subr.bf16.mxu0 0
        %1613 = vmatpush1.bf16.msra.mxu0 %v1576
        %1614 = vmatprep.subr.bf16.mxu0 0
        %1615 = vmatpush1.bf16.msra.mxu0 %v1577
        %1616 = vmatprep.subr.bf16.mxu0 0
        %1617 = vmatpush1.bf16.msra.mxu0 %v1578
        %1618 = vmatprep.subr.bf16.mxu0 0
        %1619 = vmatpush1.bf16.msra.mxu0 %v1579
        %1620 = vmatprep.subr.bf16.mxu0 0
        %1621 = vmatpush1.bf16.msra.mxu0 %v1580
        %1622 = vmatprep.subr.bf16.mxu0 0
        %1623 = vmatpush1.bf16.msra.mxu0 %v1581
        %1624 = vmatprep.subr.bf16.mxu0 0
        %1625 = vmatpush1.bf16.msra.mxu0 %v1582
        %1626 = vmatprep.subr.bf16.mxu0 0
        %1627 = vmatpush1.bf16.msra.mxu0 %v1583
        %1628 = vmatprep.subr.bf16.mxu0 0
        %1629 = vmatpush1.bf16.msra.mxu0 %v1584
        %1630 = vmatprep.subr.bf16.mxu0 0
        %1631 = vmatpush1.bf16.msra.mxu0 %v1585
        %1632 = vmatprep.subr.bf16.mxu0 0
        %1633 = vmatpush1.bf16.msra.mxu0 %v1586
        %1634 = vmatprep.subr.bf16.mxu0 0
        %1635 = vmatpush1.bf16.msra.mxu0 %v1587
        %1636 = vmatprep.mubr.bf16.mxu0 %v745
        %1637 = vmatmul.mubr.bf16.gmra.mrb[0].mxu0 %v1461
        %v1638 = vpop.f32.mrb[0].mxu0
        %v1639 = vadd.f32 %v1506, %v1638
        %v1640 = vpop.f32.mrb[0].mxu0
        %v1641 = vpop.f32.mrb[0].mxu0
        %v1642 = vadd.f32 %v1506, %v1641
        %v1643 = vpop.f32.mrb[0].mxu0
        %1644 = vmatprep.mubr.bf16.mxu0 %v746
        %1645 = vmatmul.mubr.bf16.gmra.mrb[0].mxu0 %v1462
        %v1646 = vpop.f32.mrb[0].mxu0
        %v1647 = vadd.f32 %v1506, %v1646
        %v1648 = vpop.f32.mrb[0].mxu0
        %v1649 = vpop.f32.mrb[0].mxu0
        %v1650 = vadd.f32 %v1506, %v1649
        %v1651 = vpop.f32.mrb[0].mxu0
        %1652 = vmatprep.mubr.bf16.mxu0 %v747
        %1653 = vmatmul.mubr.bf16.gmra.mrb[0].mxu0 %v1463
        %v1654 = vpop.f32.mrb[0].mxu0
        %v1655 = vadd.f32 %v1506, %v1654
        %v1656 = vpop.f32.mrb[0].mxu0
        %v1657 = vpop.f32.mrb[0].mxu0
        %v1658 = vadd.f32 %v1506, %v1657
        %v1659 = vpop.f32.mrb[0].mxu0
        %1660 = vmatprep.mubr.bf16.mxu0 %v748
        %1661 = vmatmul.mubr.bf16.gmra.mrb[0].mxu0 %v1464
        %v1662 = vpop.f32.mrb[0].mxu0
        %v1663 = vadd.f32 %v1506, %v1662
        %v1664 = vpop.f32.mrb[0].mxu0
        %v1665 = vpop.f32.mrb[0].mxu0
        %v1666 = vadd.f32 %v1506, %v1665
        %v1667 = vpop.f32.mrb[0].mxu0
        %1668 = vmatprep.mubr.bf16.mxu0 %v749
        %1669 = vmatmul.mubr.bf16.gmra.mrb[0].mxu0 %v1465
        %v1670 = vpop.f32.mrb[0].mxu0
        %v1671 = vadd.f32 %v1506, %v1670
        %v1672 = vpop.f32.mrb[0].mxu0
        %v1673 = vpop.f32.mrb[0].mxu0
        %v1674 = vadd.f32 %v1506, %v1673
        %v1675 = vpop.f32.mrb[0].mxu0
        %1676 = vmatprep.mubr.bf16.mxu0 %v750
        %1677 = vmatmul.mubr.bf16.gmra.mrb[0].mxu0 %v1466
        %v1678 = vpop.f32.mrb[0].mxu0
        %v1679 = vadd.f32 %v1506, %v1678
        %v1680 = vpop.f32.mrb[0].mxu0
        %v1681 = vpop.f32.mrb[0].mxu0
        %v1682 = vadd.f32 %v1506, %v1681
        %v1683 = vpop.f32.mrb[0].mxu0
        %1684 = vmatprep.mubr.bf16.mxu0 %v751
        %1685 = vmatmul.mubr.bf16.gmra.mrb[0].mxu0 %v1467
        %v1686 = vpop.f32.mrb[0].mxu0
        %v1687 = vadd.f32 %v1506, %v1686
        %v1688 = vpop.f32.mrb[0].mxu0
        %v1689 = vpop.f32.mrb[0].mxu0
        %v1690 = vadd.f32 %v1506, %v1689
        %v1691 = vpop.f32.mrb[0].mxu0
        %1692 = vmatprep.mubr.bf16.mxu0 %v752
        %1693 = vmatmul.mubr.bf16.gmra.mrb[0].mxu0 %v1468
        %v1694 = vpop.f32.mrb[0].mxu0
        %v1695 = vadd.f32 %v1506, %v1694
        %v1696 = vpop.f32.mrb[0].mxu0
        %v1697 = vpop.f32.mrb[0].mxu0
        %v1698 = vadd.f32 %v1506, %v1697
        %v1699 = vpop.f32.mrb[0].mxu0
        %1700 = vdwg.mxu0
        %v1701 = vmax.f32 %v1639, 0.0
        %v1702 = vmax.f32 %v1642, 0.0
        %v1703 = vmax.f32 %v1647, 0.0
        %v1704 = vmax.f32 %v1650, 0.0
        %v1705 = vmax.f32 %v1655, 0.0
        %v1706 = vmax.f32 %v1658, 0.0
        %v1707 = vmax.f32 %v1663, 0.0
        %v1708 = vmax.f32 %v1666, 0.0
        %v1709 = vmax.f32 %v1671, 0.0
        %v1710 = vmax.f32 %v1674, 0.0
        %v1711 = vmax.f32 %v1679, 0.0
        %v1712 = vmax.f32 %v1682, 0.0
        %v1713 = vmax.f32 %v1687, 0.0
        %v1714 = vmax.f32 %v1690, 0.0
        %v1715 = vmax.f32 %v1695, 0.0
        %v1716 = vmax.f32 %v1698, 0.0
        %v1717 = vpack.c.bf16 %v1702, %v1701
        %v1718 = vpack.c.bf16 %v1704, %v1703
        %v1719 = vpack.c.bf16 %v1706, %v1705
        %v1720 = vpack.c.bf16 %v1708, %v1707
        %v1721 = vpack.c.bf16 %v1710, %v1709
        %v1722 = vpack.c.bf16 %v1712, %v1711
        %v1723 = vpack.c.bf16 %v1714, %v1713
        %v1724 = vpack.c.bf16 %v1716, %v1715
        %v1725 = vld [vmem:[#allocation14] sm:$0xf]
        %v1726 = vld [vmem:[#allocation14 + $0x4] sm:$0xf]
        %v1727 = vld [vmem:[#allocation14 + $0x8] sm:$0xf]
        %v1728 = vld [vmem:[#allocation14 + $0xc] sm:$0xf]
        %v1729 = vld [vmem:[#allocation14 + $0x10] sm:$0xf]
        %v1730 = vld [vmem:[#allocation14 + $0x14] sm:$0xf]
        %v1731 = vld [vmem:[#allocation14 + $0x18] sm:$0xf]
        %v1732 = vld [vmem:[#allocation14 + $0x1c] sm:$0xf]
        %v1733 = vld [vmem:[#allocation14 + $0x20] sm:$0xf]
        %v1734 = vld [vmem:[#allocation14 + $0x24] sm:$0xf]
        %v1735 = vld [vmem:[#allocation14 + $0x28] sm:$0xf]
        %v1736 = vld [vmem:[#allocation14 + $0x2c] sm:$0xf]
        %v1737 = vld [vmem:[#allocation14 + $0x30] sm:$0xf]
        %v1738 = vld [vmem:[#allocation14 + $0x34] sm:$0xf]
        %v1739 = vld [vmem:[#allocation14 + $0x38] sm:$0xf]
        %v1740 = vld [vmem:[#allocation14 + $0x3c] sm:$0xf]
        %v1741 = vld [vmem:[%s13] sm:$0x1]
        %v1743 = vlaneseq
        %v1744 = vshrl.u32 %v1743, 7
        %v1745 = vsub.s32 0, %v1744
        %v1746 = vrot.slane %v1741, %v1745
        %v1764 = vunpack.c.l.b16 %v1725
        %v1765 = vunpack.c.l.b16 %v1726
        %v1766 = vunpack.c.l.b16 %v1727
        %v1767 = vunpack.c.l.b16 %v1728
        %v1768 = vunpack.c.l.b16 %v1729
        %v1769 = vunpack.c.l.b16 %v1730
        %v1770 = vunpack.c.l.b16 %v1731
        %v1771 = vunpack.c.l.b16 %v1732
        %v1772 = vunpack.c.l.b16 %v1733
        %v1773 = vunpack.c.l.b16 %v1734
        %v1774 = vunpack.c.l.b16 %v1735
        %v1775 = vunpack.c.l.b16 %v1736
        %v1776 = vunpack.c.l.b16 %v1737
        %v1777 = vunpack.c.l.b16 %v1738
        %v1778 = vunpack.c.l.b16 %v1739
        %v1779 = vunpack.c.l.b16 %v1740
        %v1780 = vpack.c.b16 %v1765, %v1764
        %v1781 = vpack.c.b16 %v1767, %v1766
        %v1782 = vpack.c.b16 %v1769, %v1768
        %v1783 = vpack.c.b16 %v1771, %v1770
        %v1784 = vpack.c.b16 %v1773, %v1772
        %v1785 = vpack.c.b16 %v1775, %v1774
        %v1786 = vpack.c.b16 %v1777, %v1776
        %v1787 = vpack.c.b16 %v1779, %v1778
        %1796 = vmatprep.subr.bf16.mxu0 0
        %1797 = vmatpush1.bf16.msra.mxu0 %v1780
        %1798 = vmatprep.subr.bf16.mxu0 0
        %1799 = vmatpush1.bf16.msra.mxu0 %v1781
        %1800 = vmatprep.subr.bf16.mxu0 0
        %1801 = vmatpush1.bf16.msra.mxu0 %v1782
        %1802 = vmatprep.subr.bf16.mxu0 0
        %1803 = vmatpush1.bf16.msra.mxu0 %v1783
        %1804 = vmatprep.subr.bf16.mxu0 0
        %1805 = vmatpush1.bf16.msra.mxu0 %v1784
        %1806 = vmatprep.subr.bf16.mxu0 0
        %1807 = vmatpush1.bf16.msra.mxu0 %v1785
        %1808 = vmatprep.subr.bf16.mxu0 0
        %1809 = vmatpush1.bf16.msra.mxu0 %v1786
        %1810 = vmatprep.subr.bf16.mxu0 0
        %1811 = vmatpush1.bf16.msra.mxu0 %v1787
        %1812 = vmatprep.subr.bf16.mxu0 0
        %1813 = vmatpush1.bf16.msra.mxu0 0
        %1814 = vmatprep.subr.bf16.mxu0 0
        %1815 = vmatpush1.bf16.msra.mxu0 0
        %1816 = vmatprep.subr.bf16.mxu0 0
        %1817 = vmatpush1.bf16.msra.mxu0 0
        %1818 = vmatprep.subr.bf16.mxu0 0
        %1819 = vmatpush1.bf16.msra.mxu0 0
        %1820 = vmatprep.subr.bf16.mxu0 0
        %1821 = vmatpush1.bf16.msra.mxu0 0
        %1822 = vmatprep.subr.bf16.mxu0 0
        %1823 = vmatpush1.bf16.msra.mxu0 0
        %1824 = vmatprep.subr.bf16.mxu0 0
        %1825 = vmatpush1.bf16.msra.mxu0 0
        %1826 = vmatprep.subr.bf16.mxu0 0
        %1827 = vmatpush1.bf16.msra.mxu0 0
        %1828 = vmatprep.mubr.bf16.mxu0 0
        %1829 = vmatmul.mubr.bf16.gmra.mrb[0].mxu0 %v1717
        %v1830 = vpop.f32.mrb[0].mxu0
        %v1831 = vadd.f32 %v1746, %v1830
        %v1832 = vpop.f32.mrb[0].mxu0
        %v1833 = vpop.f32.mrb[0].mxu0
        %v1834 = vadd.f32 %v1746, %v1833
        %v1835 = vpop.f32.mrb[0].mxu0
        %1836 = vmatprep.mubr.bf16.mxu0 0
        %1837 = vmatmul.mubr.bf16.gmra.mrb[0].mxu0 %v1718
        %v1838 = vpop.f32.mrb[0].mxu0
        %v1839 = vadd.f32 %v1746, %v1838
        %v1840 = vpop.f32.mrb[0].mxu0
        %v1841 = vpop.f32.mrb[0].mxu0
        %v1842 = vadd.f32 %v1746, %v1841
        %v1843 = vpop.f32.mrb[0].mxu0
        %1844 = vmatprep.mubr.bf16.mxu0 0
        %1845 = vmatmul.mubr.bf16.gmra.mrb[0].mxu0 %v1719
        %v1846 = vpop.f32.mrb[0].mxu0
        %v1847 = vadd.f32 %v1746, %v1846
        %v1848 = vpop.f32.mrb[0].mxu0
        %v1849 = vpop.f32.mrb[0].mxu0
        %v1850 = vadd.f32 %v1746, %v1849
        %v1851 = vpop.f32.mrb[0].mxu0
        %1852 = vmatprep.mubr.bf16.mxu0 0
        %1853 = vmatmul.mubr.bf16.gmra.mrb[0].mxu0 %v1720
        %v1854 = vpop.f32.mrb[0].mxu0
        %v1855 = vadd.f32 %v1746, %v1854
        %v1856 = vpop.f32.mrb[0].mxu0
        %v1857 = vpop.f32.mrb[0].mxu0
        %v1858 = vadd.f32 %v1746, %v1857
        %v1859 = vpop.f32.mrb[0].mxu0
        %1860 = vmatprep.mubr.bf16.mxu0 0
        %1861 = vmatmul.mubr.bf16.gmra.mrb[0].mxu0 %v1721
        %v1862 = vpop.f32.mrb[0].mxu0
        %v1863 = vadd.f32 %v1746, %v1862
        %v1864 = vpop.f32.mrb[0].mxu0
        %v1865 = vpop.f32.mrb[0].mxu0
        %v1866 = vadd.f32 %v1746, %v1865
        %v1867 = vpop.f32.mrb[0].mxu0
        %1868 = vmatprep.mubr.bf16.mxu0 0
        %1869 = vmatmul.mubr.bf16.gmra.mrb[0].mxu0 %v1722
        %v1870 = vpop.f32.mrb[0].mxu0
        %v1871 = vadd.f32 %v1746, %v1870
        %v1872 = vpop.f32.mrb[0].mxu0
        %v1873 = vpop.f32.mrb[0].mxu0
        %v1874 = vadd.f32 %v1746, %v1873
        %v1875 = vpop.f32.mrb[0].mxu0
        %1876 = vmatprep.mubr.bf16.mxu0 0
        %1877 = vmatmul.mubr.bf16.gmra.mrb[0].mxu0 %v1723
        %v1878 = vpop.f32.mrb[0].mxu0
        %v1879 = vadd.f32 %v1746, %v1878
        %v1880 = vpop.f32.mrb[0].mxu0
        %v1881 = vpop.f32.mrb[0].mxu0
        %v1882 = vadd.f32 %v1746, %v1881
        %v1883 = vpop.f32.mrb[0].mxu0
        %1884 = vmatprep.mubr.bf16.mxu0 0
        %1885 = vmatmul.mubr.bf16.gmra.mrb[0].mxu0 %v1724
        %v1886 = vpop.f32.mrb[0].mxu0
        %v1887 = vadd.f32 %v1746, %v1886
        %v1888 = vpop.f32.mrb[0].mxu0
        %v1889 = vpop.f32.mrb[0].mxu0
        %v1890 = vadd.f32 %v1746, %v1889
        %v1891 = vpop.f32.mrb[0].mxu0
        %1892 = vdwg.mxu0
        %v1893 = vmax.f32 %v1831, 0.0
        %v1894 = vmax.f32 %v1834, 0.0
        %v1895 = vmax.f32 %v1839, 0.0
        %v1896 = vmax.f32 %v1842, 0.0
        %v1897 = vmax.f32 %v1847, 0.0
        %v1898 = vmax.f32 %v1850, 0.0
        %v1899 = vmax.f32 %v1855, 0.0
        %v1900 = vmax.f32 %v1858, 0.0
        %v1901 = vmax.f32 %v1863, 0.0
        %v1902 = vmax.f32 %v1866, 0.0
        %v1903 = vmax.f32 %v1871, 0.0
        %v1904 = vmax.f32 %v1874, 0.0
        %v1905 = vmax.f32 %v1879, 0.0
        %v1906 = vmax.f32 %v1882, 0.0
        %v1907 = vmax.f32 %v1887, 0.0
        %v1908 = vmax.f32 %v1890, 0.0
        %v1909 = vpack.c.bf16 %v1894, %v1893
        %v1910 = vpack.c.bf16 %v1896, %v1895
        %v1911 = vpack.c.bf16 %v1898, %v1897
        %v1912 = vpack.c.bf16 %v1900, %v1899
        %v1913 = vpack.c.bf16 %v1902, %v1901
        %v1914 = vpack.c.bf16 %v1904, %v1903
        %v1915 = vpack.c.bf16 %v1906, %v1905
        %v1916 = vpack.c.bf16 %v1908, %v1907
        %s1917 = scalar_lea.vmem [#allocation14], 64
        %v1918 = vld [vmem:[%s1917] sm:$0xf]
        %v1919 = vld [vmem:[%s1917 + $0x4] sm:$0xf]
        %v1920 = vld [vmem:[%s1917 + $0x8] sm:$0xf]
        %v1921 = vld [vmem:[%s1917 + $0xc] sm:$0xf]
        %v1922 = vld [vmem:[%s1917 + $0x10] sm:$0xf]
        %v1923 = vld [vmem:[%s1917 + $0x14] sm:$0xf]
        %v1924 = vld [vmem:[%s1917 + $0x18] sm:$0xf]
        %v1925 = vld [vmem:[%s1917 + $0x1c] sm:$0xf]
        %v1926 = vld [vmem:[%s1917 + $0x20] sm:$0xf]
        %v1927 = vld [vmem:[%s1917 + $0x24] sm:$0xf]
        %v1928 = vld [vmem:[%s1917 + $0x28] sm:$0xf]
        %v1929 = vld [vmem:[%s1917 + $0x2c] sm:$0xf]
        %v1930 = vld [vmem:[%s1917 + $0x30] sm:$0xf]
        %v1931 = vld [vmem:[%s1917 + $0x34] sm:$0xf]
        %v1932 = vld [vmem:[%s1917 + $0x38] sm:$0xf]
        %v1933 = vld [vmem:[%s1917 + $0x3c] sm:$0xf]
        %s1934 = scalar_lea.vmem %s13, 1
        %v1935 = vld [vmem:[%s1934] sm:$0x1]
        %v1937 = vlaneseq
        %v1938 = vshrl.u32 %v1937, 7
        %v1939 = vsub.s32 0, %v1938
        %v1940 = vrot.slane %v1935, %v1939
        %v1958 = vunpack.c.l.b16 %v1918
        %v1959 = vunpack.c.l.b16 %v1919
        %v1960 = vunpack.c.l.b16 %v1920
        %v1961 = vunpack.c.l.b16 %v1921
        %v1962 = vunpack.c.l.b16 %v1922
        %v1963 = vunpack.c.l.b16 %v1923
        %v1964 = vunpack.c.l.b16 %v1924
        %v1965 = vunpack.c.l.b16 %v1925
        %v1966 = vunpack.c.l.b16 %v1926
        %v1967 = vunpack.c.l.b16 %v1927
        %v1968 = vunpack.c.l.b16 %v1928
        %v1969 = vunpack.c.l.b16 %v1929
        %v1970 = vunpack.c.l.b16 %v1930
        %v1971 = vunpack.c.l.b16 %v1931
        %v1972 = vunpack.c.l.b16 %v1932
        %v1973 = vunpack.c.l.b16 %v1933
        %v1974 = vpack.c.b16 %v1959, %v1958
        %v1975 = vpack.c.b16 %v1961, %v1960
        %v1976 = vpack.c.b16 %v1963, %v1962
        %v1977 = vpack.c.b16 %v1965, %v1964
        %v1978 = vpack.c.b16 %v1967, %v1966
        %v1979 = vpack.c.b16 %v1969, %v1968
        %v1980 = vpack.c.b16 %v1971, %v1970
        %v1981 = vpack.c.b16 %v1973, %v1972
        %1990 = vmatprep.subr.bf16.mxu0 0
        %1991 = vmatpush1.bf16.msra.mxu0 %v1974
        %1992 = vmatprep.subr.bf16.mxu0 0
        %1993 = vmatpush1.bf16.msra.mxu0 %v1975
        %1994 = vmatprep.subr.bf16.mxu0 0
        %1995 = vmatpush1.bf16.msra.mxu0 %v1976
        %1996 = vmatprep.subr.bf16.mxu0 0
        %1997 = vmatpush1.bf16.msra.mxu0 %v1977
        %1998 = vmatprep.subr.bf16.mxu0 0
        %1999 = vmatpush1.bf16.msra.mxu0 %v1978
        %2000 = vmatprep.subr.bf16.mxu0 0
        %2001 = vmatpush1.bf16.msra.mxu0 %v1979
        %2002 = vmatprep.subr.bf16.mxu0 0
        %2003 = vmatpush1.bf16.msra.mxu0 %v1980
        %2004 = vmatprep.subr.bf16.mxu0 0
        %2005 = vmatpush1.bf16.msra.mxu0 %v1981
        %2006 = vmatprep.subr.bf16.mxu0 0
        %2007 = vmatpush1.bf16.msra.mxu0 0
        %2008 = vmatprep.subr.bf16.mxu0 0
        %2009 = vmatpush1.bf16.msra.mxu0 0
        %2010 = vmatprep.subr.bf16.mxu0 0
        %2011 = vmatpush1.bf16.msra.mxu0 0
        %2012 = vmatprep.subr.bf16.mxu0 0
        %2013 = vmatpush1.bf16.msra.mxu0 0
        %2014 = vmatprep.subr.bf16.mxu0 0
        %2015 = vmatpush1.bf16.msra.mxu0 0
        %2016 = vmatprep.subr.bf16.mxu0 0
        %2017 = vmatpush1.bf16.msra.mxu0 0
        %2018 = vmatprep.subr.bf16.mxu0 0
        %2019 = vmatpush1.bf16.msra.mxu0 0
        %2020 = vmatprep.subr.bf16.mxu0 0
        %2021 = vmatpush1.bf16.msra.mxu0 0
        %2022 = vmatprep.mubr.bf16.mxu0 0
        %2023 = vmatmul.mubr.bf16.gmra.mrb[0].mxu0 %v1909
        %v2024 = vpop.f32.mrb[0].mxu0
        %v2025 = vadd.f32 %v1940, %v2024
        %v2026 = vpop.f32.mrb[0].mxu0
        %v2027 = vpop.f32.mrb[0].mxu0
        %v2028 = vadd.f32 %v1940, %v2027
        %v2029 = vpop.f32.mrb[0].mxu0
        %2030 = vmatprep.mubr.bf16.mxu0 0
        %2031 = vmatmul.mubr.bf16.gmra.mrb[0].mxu0 %v1910
        %v2032 = vpop.f32.mrb[0].mxu0
        %v2033 = vadd.f32 %v1940, %v2032
        %v2034 = vpop.f32.mrb[0].mxu0
        %v2035 = vpop.f32.mrb[0].mxu0
        %v2036 = vadd.f32 %v1940, %v2035
        %v2037 = vpop.f32.mrb[0].mxu0
        %2038 = vmatprep.mubr.bf16.mxu0 0
        %2039 = vmatmul.mubr.bf16.gmra.mrb[0].mxu0 %v1911
        %v2040 = vpop.f32.mrb[0].mxu0
        %v2041 = vadd.f32 %v1940, %v2040
        %v2042 = vpop.f32.mrb[0].mxu0
        %v2043 = vpop.f32.mrb[0].mxu0
        %v2044 = vadd.f32 %v1940, %v2043
        %v2045 = vpop.f32.mrb[0].mxu0
        %2046 = vmatprep.mubr.bf16.mxu0 0
        %2047 = vmatmul.mubr.bf16.gmra.mrb[0].mxu0 %v1912
        %v2048 = vpop.f32.mrb[0].mxu0
        %v2049 = vadd.f32 %v1940, %v2048
        %v2050 = vpop.f32.mrb[0].mxu0
        %v2051 = vpop.f32.mrb[0].mxu0
        %v2052 = vadd.f32 %v1940, %v2051
        %v2053 = vpop.f32.mrb[0].mxu0
        %2054 = vmatprep.mubr.bf16.mxu0 0
        %2055 = vmatmul.mubr.bf16.gmra.mrb[0].mxu0 %v1913
        %v2056 = vpop.f32.mrb[0].mxu0
        %v2057 = vadd.f32 %v1940, %v2056
        %v2058 = vpop.f32.mrb[0].mxu0
        %v2059 = vpop.f32.mrb[0].mxu0
        %v2060 = vadd.f32 %v1940, %v2059
        %v2061 = vpop.f32.mrb[0].mxu0
        %2062 = vmatprep.mubr.bf16.mxu0 0
        %2063 = vmatmul.mubr.bf16.gmra.mrb[0].mxu0 %v1914
        %v2064 = vpop.f32.mrb[0].mxu0
        %v2065 = vadd.f32 %v1940, %v2064
        %v2066 = vpop.f32.mrb[0].mxu0
        %v2067 = vpop.f32.mrb[0].mxu0
        %v2068 = vadd.f32 %v1940, %v2067
        %v2069 = vpop.f32.mrb[0].mxu0
        %2070 = vmatprep.mubr.bf16.mxu0 0
        %2071 = vmatmul.mubr.bf16.gmra.mrb[0].mxu0 %v1915
        %v2072 = vpop.f32.mrb[0].mxu0
        %v2073 = vadd.f32 %v1940, %v2072
        %v2074 = vpop.f32.mrb[0].mxu0
        %v2075 = vpop.f32.mrb[0].mxu0
        %v2076 = vadd.f32 %v1940, %v2075
        %v2077 = vpop.f32.mrb[0].mxu0
        %2078 = vmatprep.mubr.bf16.mxu0 0
        %2079 = vmatmul.mubr.bf16.gmra.mrb[0].mxu0 %v1916
        %v2080 = vpop.f32.mrb[0].mxu0
        %v2081 = vadd.f32 %v1940, %v2080
        %v2082 = vpop.f32.mrb[0].mxu0
        %v2083 = vpop.f32.mrb[0].mxu0
        %v2084 = vadd.f32 %v1940, %v2083
        %v2085 = vpop.f32.mrb[0].mxu0
        %2086 = vdwg.mxu0
        %v2087 = vmax.f32 %v2025, 0.0
        %v2088 = vmax.f32 %v2028, 0.0
        %v2089 = vmax.f32 %v2033, 0.0
        %v2090 = vmax.f32 %v2036, 0.0
        %v2091 = vmax.f32 %v2041, 0.0
        %v2092 = vmax.f32 %v2044, 0.0
        %v2093 = vmax.f32 %v2049, 0.0
        %v2094 = vmax.f32 %v2052, 0.0
        %v2095 = vmax.f32 %v2057, 0.0
        %v2096 = vmax.f32 %v2060, 0.0
        %v2097 = vmax.f32 %v2065, 0.0
        %v2098 = vmax.f32 %v2068, 0.0
        %v2099 = vmax.f32 %v2073, 0.0
        %v2100 = vmax.f32 %v2076, 0.0
        %v2101 = vmax.f32 %v2081, 0.0
        %v2102 = vmax.f32 %v2084, 0.0
        %v2103 = vpack.c.bf16 %v2088, %v2087
        %v2104 = vpack.c.bf16 %v2090, %v2089
        %v2105 = vpack.c.bf16 %v2092, %v2091
        %v2106 = vpack.c.bf16 %v2094, %v2093
        %v2107 = vpack.c.bf16 %v2096, %v2095
        %v2108 = vpack.c.bf16 %v2098, %v2097
        %v2109 = vpack.c.bf16 %v2100, %v2099
        %v2110 = vpack.c.bf16 %v2102, %v2101
        %v2111 = vld [vmem:[#allocation15] sm:$0xf]
        %v2112 = vld [vmem:[#allocation15 + $0x4] sm:$0xf]
        %v2113 = vld [vmem:[#allocation15 + $0x8] sm:$0xf]
        %v2114 = vld [vmem:[#allocation15 + $0xc] sm:$0xf]
        %v2115 = vld [vmem:[#allocation15 + $0x10] sm:$0xf]
        %v2116 = vld [vmem:[#allocation15 + $0x14] sm:$0xf]
        %v2117 = vld [vmem:[#allocation15 + $0x18] sm:$0xf]
        %v2118 = vld [vmem:[#allocation15 + $0x1c] sm:$0xf]
        %v2119 = vld [vmem:[#allocation15 + $0x20] sm:$0xf]
        %v2120 = vld [vmem:[#allocation15 + $0x24] sm:$0xf]
        %v2121 = vld [vmem:[#allocation15 + $0x28] sm:$0xf]
        %v2122 = vld [vmem:[#allocation15 + $0x2c] sm:$0xf]
        %v2123 = vld [vmem:[#allocation15 + $0x30] sm:$0xf]
        %v2124 = vld [vmem:[#allocation15 + $0x34] sm:$0xf]
        %v2125 = vld [vmem:[#allocation15 + $0x38] sm:$0xf]
        %v2126 = vld [vmem:[#allocation15 + $0x3c] sm:$0xf]
        %v2127 = vld [vmem:[%s15] sm:$0x1]
        %v2129 = vlaneseq
        %v2130 = vshrl.u32 %v2129, 7
        %v2131 = vsub.s32 0, %v2130
        %v2132 = vrot.slane %v2127, %v2131
        %v2150 = vunpack.c.l.b16 %v2111
        %v2151 = vunpack.c.l.b16 %v2112
        %v2152 = vunpack.c.l.b16 %v2113
        %v2153 = vunpack.c.l.b16 %v2114
        %v2154 = vunpack.c.l.b16 %v2115
        %v2155 = vunpack.c.l.b16 %v2116
        %v2156 = vunpack.c.l.b16 %v2117
        %v2157 = vunpack.c.l.b16 %v2118
        %v2158 = vunpack.c.l.b16 %v2119
        %v2159 = vunpack.c.l.b16 %v2120
        %v2160 = vunpack.c.l.b16 %v2121
        %v2161 = vunpack.c.l.b16 %v2122
        %v2162 = vunpack.c.l.b16 %v2123
        %v2163 = vunpack.c.l.b16 %v2124
        %v2164 = vunpack.c.l.b16 %v2125
        %v2165 = vunpack.c.l.b16 %v2126
        %v2166 = vpack.c.b16 %v2151, %v2150
        %v2167 = vpack.c.b16 %v2153, %v2152
        %v2168 = vpack.c.b16 %v2155, %v2154
        %v2169 = vpack.c.b16 %v2157, %v2156
        %v2170 = vpack.c.b16 %v2159, %v2158
        %v2171 = vpack.c.b16 %v2161, %v2160
        %v2172 = vpack.c.b16 %v2163, %v2162
        %v2173 = vpack.c.b16 %v2165, %v2164
        %2182 = vmatprep.subr.bf16.mxu0 0
        %2183 = vmatpush1.bf16.msra.mxu0 %v2166
        %2184 = vmatprep.subr.bf16.mxu0 0
        %2185 = vmatpush1.bf16.msra.mxu0 %v2167
        %2186 = vmatprep.subr.bf16.mxu0 0
        %2187 = vmatpush1.bf16.msra.mxu0 %v2168
        %2188 = vmatprep.subr.bf16.mxu0 0
        %2189 = vmatpush1.bf16.msra.mxu0 %v2169
        %2190 = vmatprep.subr.bf16.mxu0 0
        %2191 = vmatpush1.bf16.msra.mxu0 %v2170
        %2192 = vmatprep.subr.bf16.mxu0 0
        %2193 = vmatpush1.bf16.msra.mxu0 %v2171
        %2194 = vmatprep.subr.bf16.mxu0 0
        %2195 = vmatpush1.bf16.msra.mxu0 %v2172
        %2196 = vmatprep.subr.bf16.mxu0 0
        %2197 = vmatpush1.bf16.msra.mxu0 %v2173
        %2198 = vmatprep.subr.bf16.mxu0 0
        %2199 = vmatpush1.bf16.msra.mxu0 0
        %2200 = vmatprep.subr.bf16.mxu0 0
        %2201 = vmatpush1.bf16.msra.mxu0 0
        %2202 = vmatprep.subr.bf16.mxu0 0
        %2203 = vmatpush1.bf16.msra.mxu0 0
        %2204 = vmatprep.subr.bf16.mxu0 0
        %2205 = vmatpush1.bf16.msra.mxu0 0
        %2206 = vmatprep.subr.bf16.mxu0 0
        %2207 = vmatpush1.bf16.msra.mxu0 0
        %2208 = vmatprep.subr.bf16.mxu0 0
        %2209 = vmatpush1.bf16.msra.mxu0 0
        %2210 = vmatprep.subr.bf16.mxu0 0
        %2211 = vmatpush1.bf16.msra.mxu0 0
        %2212 = vmatprep.subr.bf16.mxu0 0
        %2213 = vmatpush1.bf16.msra.mxu0 0
        %2214 = vmatprep.mubr.bf16.mxu0 0
        %2215 = vmatmul.mubr.bf16.gmra.mrb[0].mxu0 %v2103
        %v2216 = vpop.f32.mrb[0].mxu0
        %v2217 = vadd.f32 %v2132, %v2216
        %v2218 = vpop.f32.mrb[0].mxu0
        %v2219 = vpop.f32.mrb[0].mxu0
        %v2220 = vadd.f32 %v2132, %v2219
        %v2221 = vpop.f32.mrb[0].mxu0
        %2222 = vmatprep.mubr.bf16.mxu0 0
        %2223 = vmatmul.mubr.bf16.gmra.mrb[0].mxu0 %v2104
        %v2224 = vpop.f32.mrb[0].mxu0
        %v2225 = vadd.f32 %v2132, %v2224
        %v2226 = vpop.f32.mrb[0].mxu0
        %v2227 = vpop.f32.mrb[0].mxu0
        %v2228 = vadd.f32 %v2132, %v2227
        %v2229 = vpop.f32.mrb[0].mxu0
        %2230 = vmatprep.mubr.bf16.mxu0 0
        %2231 = vmatmul.mubr.bf16.gmra.mrb[0].mxu0 %v2105
        %v2232 = vpop.f32.mrb[0].mxu0
        %v2233 = vadd.f32 %v2132, %v2232
        %v2234 = vpop.f32.mrb[0].mxu0
        %v2235 = vpop.f32.mrb[0].mxu0
        %v2236 = vadd.f32 %v2132, %v2235
        %v2237 = vpop.f32.mrb[0].mxu0
        %2238 = vmatprep.mubr.bf16.mxu0 0
        %2239 = vmatmul.mubr.bf16.gmra.mrb[0].mxu0 %v2106
        %v2240 = vpop.f32.mrb[0].mxu0
        %v2241 = vadd.f32 %v2132, %v2240
        %v2242 = vpop.f32.mrb[0].mxu0
        %v2243 = vpop.f32.mrb[0].mxu0
        %v2244 = vadd.f32 %v2132, %v2243
        %v2245 = vpop.f32.mrb[0].mxu0
        %2246 = vmatprep.mubr.bf16.mxu0 0
        %2247 = vmatmul.mubr.bf16.gmra.mrb[0].mxu0 %v2107
        %v2248 = vpop.f32.mrb[0].mxu0
        %v2249 = vadd.f32 %v2132, %v2248
        %v2250 = vpop.f32.mrb[0].mxu0
        %v2251 = vpop.f32.mrb[0].mxu0
        %v2252 = vadd.f32 %v2132, %v2251
        %v2253 = vpop.f32.mrb[0].mxu0
        %2254 = vmatprep.mubr.bf16.mxu0 0
        %2255 = vmatmul.mubr.bf16.gmra.mrb[0].mxu0 %v2108
        %v2256 = vpop.f32.mrb[0].mxu0
        %v2257 = vadd.f32 %v2132, %v2256
        %v2258 = vpop.f32.mrb[0].mxu0
        %v2259 = vpop.f32.mrb[0].mxu0
        %v2260 = vadd.f32 %v2132, %v2259
        %v2261 = vpop.f32.mrb[0].mxu0
        %2262 = vmatprep.mubr.bf16.mxu0 0
        %2263 = vmatmul.mubr.bf16.gmra.mrb[0].mxu0 %v2109
        %v2264 = vpop.f32.mrb[0].mxu0
        %v2265 = vadd.f32 %v2132, %v2264
        %v2266 = vpop.f32.mrb[0].mxu0
        %v2267 = vpop.f32.mrb[0].mxu0
        %v2268 = vadd.f32 %v2132, %v2267
        %v2269 = vpop.f32.mrb[0].mxu0
        %2270 = vmatprep.mubr.bf16.mxu0 0
        %2271 = vmatmul.mubr.bf16.gmra.mrb[0].mxu0 %v2110
        %v2272 = vpop.f32.mrb[0].mxu0
        %v2273 = vadd.f32 %v2132, %v2272
        %v2274 = vpop.f32.mrb[0].mxu0
        %v2275 = vpop.f32.mrb[0].mxu0
        %v2276 = vadd.f32 %v2132, %v2275
        %v2277 = vpop.f32.mrb[0].mxu0
        %2278 = vdwg.mxu0
        %v2279 = vsub.f32 1.0, %v1438
        %v2281 = vlaneseq
        %v2282 = vshrl.u32 %v2281, 7
        %v2283 = vsub.s32 0, %v2282
        %v2284 = vrot.slane %v2279, %v2283
        %v2286 = vmul.f32 %v2284, %v2217
        %v2287 = vmul.f32 %v2284, %v2220
        %v2288 = vmul.f32 %v2284, %v2225
        %v2289 = vmul.f32 %v2284, %v2228
        %v2290 = vmul.f32 %v2284, %v2233
        %v2291 = vmul.f32 %v2284, %v2236
        %v2292 = vmul.f32 %v2284, %v2241
        %v2293 = vmul.f32 %v2284, %v2244
        %v2294 = vmul.f32 %v2284, %v2249
        %v2295 = vmul.f32 %v2284, %v2252
        %v2296 = vmul.f32 %v2284, %v2257
        %v2297 = vmul.f32 %v2284, %v2260
        %v2298 = vmul.f32 %v2284, %v2265
        %v2299 = vmul.f32 %v2284, %v2268
        %v2300 = vmul.f32 %v2284, %v2273
        %v2301 = vmul.f32 %v2284, %v2276
        %v2302 = vadd.f32 %v1376, %v2286
        %v2303 = vadd.f32 %v1379, %v2287
        %v2304 = vadd.f32 %v1384, %v2288
        %v2305 = vadd.f32 %v1387, %v2289
        %v2306 = vadd.f32 %v1392, %v2290
        %v2307 = vadd.f32 %v1395, %v2291
        %v2308 = vadd.f32 %v1400, %v2292
        %v2309 = vadd.f32 %v1403, %v2293
        %v2310 = vadd.f32 %v1408, %v2294
        %v2311 = vadd.f32 %v1411, %v2295
        %v2312 = vadd.f32 %v1416, %v2296
        %v2313 = vadd.f32 %v1419, %v2297
        %v2314 = vadd.f32 %v1424, %v2298
        %v2315 = vadd.f32 %v1427, %v2299
        %v2316 = vadd.f32 %v1432, %v2300
        %v2317 = vadd.f32 %v1435, %v2301
        %2318 = vst [vmem:[%s695] sm:$0xff] %v2302
        %2319 = vst [vmem:[%s695 + $0x8] sm:$0xff] %v2303
        %2320 = vst [vmem:[%s695 + $0x10] sm:$0xff] %v2304
        %2321 = vst [vmem:[%s695 + $0x18] sm:$0xff] %v2305
        %2322 = vst [vmem:[%s695 + $0x20] sm:$0xff] %v2306
        %2323 = vst [vmem:[%s695 + $0x28] sm:$0xff] %v2307
        %2324 = vst [vmem:[%s695 + $0x30] sm:$0xff] %v2308
        %2325 = vst [vmem:[%s695 + $0x38] sm:$0xff] %v2309
        %2326 = vst [vmem:[%s695 + $0x40] sm:$0xff] %v2310
        %2327 = vst [vmem:[%s695 + $0x48] sm:$0xff] %v2311
        %2328 = vst [vmem:[%s695 + $0x50] sm:$0xff] %v2312
        %2329 = vst [vmem:[%s695 + $0x58] sm:$0xff] %v2313
        %2330 = vst [vmem:[%s695 + $0x60] sm:$0xff] %v2314
        %2331 = vst [vmem:[%s695 + $0x68] sm:$0xff] %v2315
        %2332 = vst [vmem:[%s695 + $0x70] sm:$0xff] %v2316
        %2333 = vst [vmem:[%s695 + $0x78] sm:$0xff] %v2317
        %s2334 = sld [smem:[#allocation2]]
        %v2335 = vstv %s2334
        %v2336 = vadd.f32 %v1231, %v2335
        %v2337 = vadd.f32 %v1233, %v2335
        %v2338 = vadd.f32 %v1235, %v2335
        %v2339 = vadd.f32 %v1237, %v2335
        %v2340 = vadd.f32 %v1239, %v2335
        %v2341 = vadd.f32 %v1241, %v2335
        %v2342 = vadd.f32 %v1243, %v2335
        %v2343 = vadd.f32 %v1245, %v2335
        %v2344 = vadd.f32 %v1247, %v2335
        %v2345 = vadd.f32 %v1249, %v2335
        %v2346 = vadd.f32 %v1251, %v2335
        %v2347 = vadd.f32 %v1253, %v2335
        %v2348 = vadd.f32 %v1255, %v2335
        %v2349 = vadd.f32 %v1257, %v2335
        %v2350 = vadd.f32 %v1259, %v2335
        %v2351 = vadd.f32 %v1261, %v2335
        %vm2352 = vcmask 7168
        %2353 = vst.msk [vmem:[%s710] sm:$0xff] %vm2352, %v2336
        %2354 = vst.msk [vmem:[%s710 + $0x8] sm:$0xff] %vm2352, %v2337
        %2355 = vst.msk [vmem:[%s710 + $0x10] sm:$0xff] %vm2352, %v2338
        %2356 = vst.msk [vmem:[%s710 + $0x18] sm:$0xff] %vm2352, %v2339
        %2357 = vst.msk [vmem:[%s710 + $0x20] sm:$0xff] %vm2352, %v2340
        %2358 = vst.msk [vmem:[%s710 + $0x28] sm:$0xff] %vm2352, %v2341
        %2359 = vst.msk [vmem:[%s710 + $0x30] sm:$0xff] %vm2352, %v2342
        %2360 = vst.msk [vmem:[%s710 + $0x38] sm:$0xff] %vm2352, %v2343
        %2361 = vst.msk [vmem:[%s710 + $0x40] sm:$0xff] %vm2352, %v2344
        %2362 = vst.msk [vmem:[%s710 + $0x48] sm:$0xff] %vm2352, %v2345
        %2363 = vst.msk [vmem:[%s710 + $0x50] sm:$0xff] %vm2352, %v2346
        %2364 = vst.msk [vmem:[%s710 + $0x58] sm:$0xff] %vm2352, %v2347
        %2365 = vst.msk [vmem:[%s710 + $0x60] sm:$0xff] %vm2352, %v2348
        %2366 = vst.msk [vmem:[%s710 + $0x68] sm:$0xff] %vm2352, %v2349
        %2367 = vst.msk [vmem:[%s710 + $0x70] sm:$0xff] %vm2352, %v2350
        %2368 = vst.msk [vmem:[%s710 + $0x78] sm:$0xff] %vm2352, %v2351
        %s2369 = sand.u32 %s396, 1
        %s2370 = scalar_lea.sflag [#allocation5], %s2369
        %s2371 = sand.u32 %s396, 1
        %s2372 = smul.addr %s2371, 128
        %s2373 = scalar_lea.vmem [#allocation17], %s2372
        %s2374 = smul.u32 16, %s42
        %p2375 = scmp.lt.s32.totalorder %s2374, 63
        %s2376 = scalar_select %p2375, %s2374, 63
        %s2377 = smul.addr %s2376, 8
        %s2378 = scalar_lea.vmem %s17, %s2377
        // Predicated region
        $region117: #{tpu_custom_call.1} parent=83 // pred_check
          %p2379 = pneg %p406
        $region118: #{tpu_custom_call.1} parent=83 // pred_check_branch
          %2381 = sbr.rel (%p2379) target = $region120
        $region119: #{tpu_custom_call.1} parent=83 // pred_region
          %s2382 = smul.u32 16, %s42
          %s2384 = ssub.s32 2048, 2048
          %2385 = vsyncadd %s2370, %s2384
          %s2386 = smul.addr %s2382, 128
          %s2387 = scalar_lea.hbm %s16, %s2386
          %s2388 = sshll.u32 %s2373, 4
          %s2389 = int_to_ptr.vmem [resolvable:$true] %s2388
          %2394 = dma.vmem_to_hbm [thread:$0]  %s2389, 2048, %s2387, %s2370, 128, 128, 8
        $region120: #{tpu_custom_call.1} parent=83 // pred_fallthru
          _
        // Predicated region
        $region121: #{tpu_custom_call.1} parent=83 // pred_check
          %p2395 = pneg %p432
        $region122: #{tpu_custom_call.1} parent=83 // pred_check_branch
          %2397 = sbr.rel (%p2395) target = $region124
        $region123: #{tpu_custom_call.1} parent=83 // pred_region
          %s2398 = smul.u32 16, %s42
        $region124: #{tpu_custom_call.1} parent=83 // pred_fallthru
          _
      $region84: #{tpu_custom_call.1} parent=5 // pred_fallthru
        _
      %p2399 = scmp.le.s32.totalorder 2, %s37
      // Predicated region
      $region125: #{tpu_custom_call.1} parent=5 // pred_check
        %p2400 = pneg %p2399
      $region126: #{tpu_custom_call.1} parent=5 // pred_check_branch
        %2402 = sbr.rel (%p2400) target = $region128
      $region127: #{tpu_custom_call.1} parent=5 // pred_region
        %s2403 = ssub.s32 %s37, 2
        // Predicated region
        $region129: #{tpu_custom_call.1} parent=127 // pred_check
          %p2404 = pneg %p412
        $region130: #{tpu_custom_call.1} parent=127 // pred_check_branch
          %2406 = sbr.rel (%p2404) target = $region132
        $region131: #{tpu_custom_call.1} parent=127 // pred_region
          %s2407 = sand.u32 %s397, 1
          %s2408 = scalar_lea.sflag [#allocation5], %s2407
          %s2409 = sand.u32 %s397, 1
          %s2410 = smul.addr %s2409, 128
          %s2411 = scalar_lea.vmem [#allocation17], %s2410
          %2412 = dma.done %s2408, 2048
        $region132: #{tpu_custom_call.1} parent=127 // pred_fallthru
          _
        // Predicated region
        $region133: #{tpu_custom_call.1} parent=127 // pred_check
          %p2413 = pneg %p438
        $region134: #{tpu_custom_call.1} parent=127 // pred_check_branch
          %2415 = sbr.rel (%p2413) target = $region136
        $region135: #{tpu_custom_call.1} parent=127 // pred_region
          %s2416 = smul.u32 16, %s43
          %p2417 = scmp.lt.s32.totalorder %s2416, 63
          %s2418 = scalar_select %p2417, %s2416, 63
          %s2419 = smul.addr %s2418, 8
          %s2420 = scalar_lea.vmem %s17, %s2419
        $region136: #{tpu_custom_call.1} parent=127 // pred_fallthru
          _
      $region128: #{tpu_custom_call.1} parent=5 // pred_fallthru
        _
    $region6: #{tpu_custom_call.1} parent=1 // loop_footer
      %s41 = sadd.s32 1, %s37
    $region7: #{tpu_custom_call.1} parent=1 // loop_footer_branch
      %36 = sbr.rel target = $region3
    $region8: #{tpu_custom_call.1} parent=1 // loop_exit
      _
    %2421 = vsyncpa [#allocation4], 1
    %s2422 = scalar_lea.sflag [#allocation4], 1
    %2423 = vsyncpa %s2422, 1
    %2424 = vsyncpa [#allocation7], 1
    %s2425 = scalar_lea.sflag [#allocation7], 1
    %2426 = vsyncpa %s2425, 1
    %2427 = vsyncpa [#allocation10], 1
    %2428 = vsyncpa [#allocation13], 1
    %2429 = vsyncpa [#allocation16], 1
    %2430 = vsyncpa [#allocation5], 1
    %s2431 = scalar_lea.sflag [#allocation5], 1
    %2432 = vsyncpa %s2431, 1

</llo_original>
